<compile_context>
chip_gen: v6e
topology: v6e:2x2x1
jax: 0.10.0
libtpu: 0.0.40
codegen_flags: <defaults>
</compile_context>

<pallas_src>
import functools

import jax
import jax.numpy as jnp
from jax.experimental import pallas as pl
from jax.experimental.pallas import tpu as pltpu

NEG_SLOPE = 0.01  # F.leaky_relu default


def _leaky(v):
    return jnp.where(v > 0, v, NEG_SLOPE * v)


def _shift_lanes(x, delta):
    """out[..., i] = x[..., i + delta] if 0 <= i + delta < L else 0 (static delta)."""
    if delta == 0:
        return x
    L = x.shape[-1]
    pad = jnp.zeros(x.shape[:-1] + (abs(delta),), x.dtype)
    if delta > 0:
        return jnp.concatenate([x[..., delta:], pad], axis=-1)
    return jnp.concatenate([pad, x[..., :L + delta]], axis=-1)


def _ral_kernel(W, x_ref, wtaps_ref, wmask_ref, w21_ref, w22_ref, w31_ref,
                w32_ref, w12_ref, o_ref):
    N, C, HW = x_ref.shape[1], x_ref.shape[2], x_ref.shape[3]

    # ---- reductions: frame mean + pooled vectors (all stay on-chip) -------
    xb = x_ref[0]                                          # (N, C, HW)
    mean_n = jnp.mean(xb, axis=0)                          # (C, HW)  mean over frames
    pc_col = jnp.mean(mean_n, axis=-1, keepdims=True)      # (C, 1)   CAL input
    pn_col = jnp.mean(jnp.mean(xb, axis=1), axis=-1, keepdims=True)  # (N, 1) TAL input

    # ---- SAL: 3x3 conv (C->1, pad=1) + leaky, then 1x1 conv + leaky -------
    # Channel contraction on the MXU, spatial taps as static lane shifts.
    taps = jnp.dot(wtaps_ref[...], mean_n,
                   preferred_element_type=jnp.float32)     # (9, HW)
    conv = jnp.zeros((1, HW), jnp.float32)
    for kh in range(3):
        for kw in range(3):
            dh, dw = kh - 1, kw - 1
            k = kh * 3 + kw
            s = _shift_lanes(taps[k:k + 1, :], dh * W + dw)
            if dw == -1:                                   # mask row-wrap at w=0
                s = s * wmask_ref[0:1, :]
            elif dw == 1:                                  # mask row-wrap at w=W-1
                s = s * wmask_ref[1:2, :]
            conv = conv + s
    sal = _leaky(conv)                                     # conv1_1 + leaky
    sal = _leaky(w12_ref[0] * sal)                         # conv1_2 + leaky  (1, HW)

    # ---- CAL / TAL tiny 1x1-conv MLPs (stay on-chip) ----------------------
    h1 = _leaky(jnp.dot(w21_ref[...], pc_col, preferred_element_type=jnp.float32))
    cal = _leaky(jnp.dot(w22_ref[...], h1, preferred_element_type=jnp.float32))   # (C, 1)
    h2 = _leaky(jnp.dot(w31_ref[...], pn_col, preferred_element_type=jnp.float32))
    tal = _leaky(jnp.dot(w32_ref[...], h2, preferred_element_type=jnp.float32))   # (N, 1)

    # ---- fused gating: out = x * (0.5 + sigmoid(tal_n * (cal * sal))) -----
    cs = cal * sal                                         # (C, HW), hoisted once
    for n in range(N):
        g = tal[n:n + 1, :] * cs                           # (C, HW)
        o_ref[0, n] = x_ref[0, n] * (0.5 + jax.nn.sigmoid(g))


def ral_forward(x, p):
    B, N, C, H, W = x.shape
    HW = H * W
    x_flat = x.reshape(B, N, C, HW)

    # 3x3 conv taps: row k = kh*3+kw, wtaps[k, c] = w11[0, c, kh, kw]
    wtaps = jnp.transpose(p['w11'][0], (1, 2, 0)).reshape(9, C)
    # Row-edge validity masks for dw = -1 (row 0) and dw = +1 (row 1).
    w_idx = jnp.arange(HW, dtype=jnp.int32) % W
    wmask = jnp.stack([(w_idx >= 1).astype(jnp.float32),
                       (w_idx <= W - 2).astype(jnp.float32)], axis=0)  # (2, HW)
    w21m = p['w21'][:, :, 0, 0]          # (C//16, C)
    w22m = p['w22'][:, :, 0, 0]          # (C, C//16)
    w31m = p['w31'][:, :, 0, 0]          # (N, N)
    w32m = p['w32'][:, :, 0, 0]          # (N, N)
    w12s = jnp.reshape(p['w12'], (1,)).astype(jnp.float32)

    out_flat = pl.pallas_call(
        functools.partial(_ral_kernel, W),
        out_shape=jax.ShapeDtypeStruct((B, N, C, HW), jnp.float32),
        grid=(B,),
        in_specs=[
            pl.BlockSpec((1, N, C, HW), lambda i: (i, 0, 0, 0)),
            pl.BlockSpec((9, C), lambda i: (0, 0)),
            pl.BlockSpec((2, HW), lambda i: (0, 0)),
            pl.BlockSpec((C // 16, C), lambda i: (0, 0)),
            pl.BlockSpec((C, C // 16), lambda i: (0, 0)),
            pl.BlockSpec((N, N), lambda i: (0, 0)),
            pl.BlockSpec((N, N), lambda i: (0, 0)),
            pl.BlockSpec(memory_space=pltpu.MemorySpace.SMEM),
        ],
        out_specs=pl.BlockSpec((1, N, C, HW), lambda i: (i, 0, 0, 0)),
        compiler_params=pltpu.CompilerParams(
            dimension_semantics=("parallel",),
            vmem_limit_bytes=32 * 1024 * 1024),
    )(x_flat, wtaps, wmask, w21m, w22m, w31m, w32m, w12s)
    return out_flat.reshape(B, N, C, H, W)


# plain-JAX reference (mirrors the PyTorch forward) for a correctness check
def ral_reference(x, p):
    mean_n = jnp.mean(x, axis=1)                                    # (B,C,H,W)
    y = jax.lax.conv_general_dilated(
        mean_n, p['w11'], (1, 1), ((1, 1), (1, 1)),
        dimension_numbers=('NCHW', 'OIHW', 'NCHW'))
    y = _leaky(y)
    y = _leaky(p['w12'].reshape(()) * y)                            # (B,1,H,W)
    x_SAL = y[:, None]                                              # (B,1,1,H,W)
    pc = jnp.mean(mean_n, axis=(2, 3))                              # (B,C)
    h = _leaky(pc @ p['w21'][:, :, 0, 0].T)
    cal = _leaky(h @ p['w22'][:, :, 0, 0].T)
    x_CAL = cal[:, None, :, None, None]                             # (B,1,C,1,1)
    pn = jnp.mean(jnp.mean(x, axis=2), axis=(2, 3))                 # (B,N)
    h = _leaky(pn @ p['w31'][:, :, 0, 0].T)
    tal = _leaky(h @ p['w32'][:, :, 0, 0].T)
    x_TAL = tal[:, :, None, None, None]                             # (B,N,1,1,1)
    x_RAL = jax.nn.sigmoid(x_SAL * x_TAL * x_CAL) * x
    return 0.5 * x + x_RAL


if __name__ == "__main__":
    B, N, C, H, W = 2, 8, 32, 16, 16      # frame_num=8, in_channels=32 (>=16)
    key = jax.random.PRNGKey(0)
    kx, k1, k2, k3, k4, k5, k6 = jax.random.split(key, 7)

    x = jax.random.normal(kx, (B, N, C, H, W), jnp.float32)
    params = {
        'w11': 0.1 * jax.random.normal(k1, (1, C, 3, 3), jnp.float32),
        'w12': 0.8 + 0.1 * jax.random.normal(k2, (1, 1, 1, 1), jnp.float32),
        'w21': 0.2 * jax.random.normal(k3, (C // 16, C, 1, 1), jnp.float32),
        'w22': 0.2 * jax.random.normal(k4, (C, C // 16, 1, 1), jnp.float32),
        'w31': 0.2 * jax.random.normal(k5, (N, N, 1, 1), jnp.float32),
        'w32': 0.2 * jax.random.normal(k6, (N, N, 1, 1), jnp.float32),
    }

    out = jax.jit(ral_forward)(x, params)
    out = jax.block_until_ready(out)

    ref = ral_reference(x, params)
    assert out.shape == (B, N, C, H, W)
    assert jnp.allclose(out, ref, atol=1e-4, rtol=1e-4), \
        float(jnp.max(jnp.abs(out - ref)))

    print("KERNEL_OK")
</pallas_src>

<mosaic_0001>
module attributes {stable_mosaic.version = 11 : i64} {
  func.func @_ral_kernel(%arg0: i32, %arg1: memref<1x8x32x256xf32, #tpu.memory_space<vmem>>, %arg2: memref<9x32xf32, #tpu.memory_space<vmem>>, %arg3: memref<2x256xf32, #tpu.memory_space<vmem>>, %arg4: memref<2x32xf32, #tpu.memory_space<vmem>>, %arg5: memref<32x2xf32, #tpu.memory_space<vmem>>, %arg6: memref<8x8xf32, #tpu.memory_space<vmem>>, %arg7: memref<8x8xf32, #tpu.memory_space<vmem>>, %arg8: memref<1xf32, #tpu.memory_space<smem>>, %arg9: memref<1x8x32x256xf32, #tpu.memory_space<vmem>>) attributes {dimension_semantics = [#tpu.dimension_semantics<parallel>], iteration_bounds = array<i64: 2>, scalar_prefetch = 0 : i64, scratch_operands = 0 : i64, tpu.core_type = #tpu.core_type<tc>, window_params = [{transform_indices = @transform_0, window_bounds = array<i64: 1, 8, 32, 256>}, {pipeline_mode = #tpu.pipeline_mode<synchronous>, transform_indices = @transform_1, window_bounds = array<i64: 9, 32>}, {pipeline_mode = #tpu.pipeline_mode<synchronous>, transform_indices = @transform_2, window_bounds = array<i64: 2, 256>}, {pipeline_mode = #tpu.pipeline_mode<synchronous>, transform_indices = @transform_3, window_bounds = array<i64: 2, 32>}, {pipeline_mode = #tpu.pipeline_mode<synchronous>, transform_indices = @transform_4, window_bounds = array<i64: 32, 2>}, {pipeline_mode = #tpu.pipeline_mode<synchronous>, transform_indices = @transform_5, window_bounds = array<i64: 8, 8>}, {pipeline_mode = #tpu.pipeline_mode<synchronous>, transform_indices = @transform_6, window_bounds = array<i64: 8, 8>}, {transform_indices = @transform_7, window_bounds = array<i64: 1>}, {transform_indices = @transform_8, window_bounds = array<i64: 1, 8, 32, 256>}]} {
    %c0 = arith.constant 0 : index
    %c0_0 = arith.constant 0 : index
    %c0_1 = arith.constant 0 : index
    %c0_2 = arith.constant 0 : index
    %0 = vector.load %arg1[%c0, %c0_0, %c0_1, %c0_2] : memref<1x8x32x256xf32, #tpu.memory_space<vmem>>, vector<1x8x32x256xf32>
    %1 = vector.shape_cast %0 : vector<1x8x32x256xf32> to vector<8x32x256xf32>
    %cst = arith.constant dense<0.000000e+00> : vector<32x256xf32>
    %2 = vector.multi_reduction <add>, %1, %cst [0] : vector<8x32x256xf32> to vector<32x256xf32>
    %cst_3 = arith.constant 8.000000e+00 : f32
    %3 = vector.broadcast %cst_3 : f32 to vector<32x256xf32>
    %4 = arith.divf %2, %3 : vector<32x256xf32>
    %cst_4 = arith.constant dense<0.000000e+00> : vector<32xf32>
    %5 = vector.multi_reduction <add>, %4, %cst_4 [1] : vector<32x256xf32> to vector<32xf32>
    %6 = vector.shape_cast %5 : vector<32xf32> to vector<32x1xf32>
    %cst_5 = arith.constant 2.560000e+02 : f32
    %7 = vector.broadcast %cst_5 : f32 to vector<32x1xf32>
    %8 = arith.divf %6, %7 : vector<32x1xf32>
    %cst_6 = arith.constant dense<0.000000e+00> : vector<8x256xf32>
    %9 = vector.multi_reduction <add>, %1, %cst_6 [1] : vector<8x32x256xf32> to vector<8x256xf32>
    %cst_7 = arith.constant 3.200000e+01 : f32
    %10 = vector.broadcast %cst_7 : f32 to vector<8x256xf32>
    %11 = arith.divf %9, %10 : vector<8x256xf32>
    %cst_8 = arith.constant dense<0.000000e+00> : vector<8xf32>
    %12 = vector.multi_reduction <add>, %11, %cst_8 [1] : vector<8x256xf32> to vector<8xf32>
    %13 = vector.shape_cast %12 : vector<8xf32> to vector<8x1xf32>
    %cst_9 = arith.constant 2.560000e+02 : f32
    %14 = vector.broadcast %cst_9 : f32 to vector<8x1xf32>
    %15 = arith.divf %13, %14 : vector<8x1xf32>
    %c0_10 = arith.constant 0 : index
    %c0_11 = arith.constant 0 : index
    %16 = vector.load %arg2[%c0_10, %c0_11] : memref<9x32xf32, #tpu.memory_space<vmem>>, vector<9x32xf32>
    %cst_12 = arith.constant dense<0.000000e+00> : vector<9x256xf32>
    %17 = tpu.matmul %16, %4, %cst_12 {dimension_numbers = #tpu.dot_dimension_numbers<[1], [0], [0], [1], [0, 0, 1, 1], [], []>} : vector<9x32xf32>, vector<32x256xf32>, vector<9x256xf32> -> vector<9x256xf32>
    %cst_13 = arith.constant 0.000000e+00 : f32
    %18 = vector.broadcast %cst_13 : f32 to vector<1x256xf32>
    %19 = vector.extract_strided_slice %17 {offsets = [0, 0], sizes = [1, 256], strides = [1, 1]} : vector<9x256xf32> to vector<1x256xf32>
    %cst_14 = arith.constant 0.000000e+00 : f32
    %20 = vector.broadcast %cst_14 : f32 to vector<1x17xf32>
    %21 = vector.extract_strided_slice %19 {offsets = [0, 0], sizes = [1, 239], strides = [1, 1]} : vector<1x256xf32> to vector<1x239xf32>
    %22 = tpu.concatenate %20, %21 in 1 : vector<1x17xf32>, vector<1x239xf32> -> vector<1x256xf32>
    %c0_15 = arith.constant 0 : index
    %c0_16 = arith.constant 0 : index
    %23 = vector.load %arg3[%c0_15, %c0_16] : memref<2x256xf32, #tpu.memory_space<vmem>>, vector<1x256xf32>
    %24 = arith.mulf %22, %23 : vector<1x256xf32>
    %25 = arith.addf %18, %24 : vector<1x256xf32>
    %26 = vector.extract_strided_slice %17 {offsets = [1, 0], sizes = [1, 256], strides = [1, 1]} : vector<9x256xf32> to vector<1x256xf32>
    %cst_17 = arith.constant 0.000000e+00 : f32
    %27 = vector.broadcast %cst_17 : f32 to vector<1x16xf32>
    %28 = vector.extract_strided_slice %26 {offsets = [0, 0], sizes = [1, 240], strides = [1, 1]} : vector<1x256xf32> to vector<1x240xf32>
    %29 = tpu.concatenate %27, %28 in 1 : vector<1x16xf32>, vector<1x240xf32> -> vector<1x256xf32>
    %30 = arith.addf %25, %29 : vector<1x256xf32>
    %31 = vector.extract_strided_slice %17 {offsets = [2, 0], sizes = [1, 256], strides = [1, 1]} : vector<9x256xf32> to vector<1x256xf32>
    %cst_18 = arith.constant 0.000000e+00 : f32
    %32 = vector.broadcast %cst_18 : f32 to vector<1x15xf32>
    %33 = vector.extract_strided_slice %31 {offsets = [0, 0], sizes = [1, 241], strides = [1, 1]} : vector<1x256xf32> to vector<1x241xf32>
    %34 = tpu.concatenate %32, %33 in 1 : vector<1x15xf32>, vector<1x241xf32> -> vector<1x256xf32>
    %c1 = arith.constant 1 : index
    %c0_19 = arith.constant 0 : index
    %35 = vector.load %arg3[%c1, %c0_19] : memref<2x256xf32, #tpu.memory_space<vmem>>, vector<1x256xf32>
    %36 = arith.mulf %34, %35 : vector<1x256xf32>
    %37 = arith.addf %30, %36 : vector<1x256xf32>
    %38 = vector.extract_strided_slice %17 {offsets = [3, 0], sizes = [1, 256], strides = [1, 1]} : vector<9x256xf32> to vector<1x256xf32>
    %cst_20 = arith.constant 0.000000e+00 : f32
    %39 = vector.broadcast %cst_20 : f32 to vector<1x1xf32>
    %40 = vector.extract_strided_slice %38 {offsets = [0, 0], sizes = [1, 255], strides = [1, 1]} : vector<1x256xf32> to vector<1x255xf32>
    %41 = tpu.concatenate %39, %40 in 1 : vector<1x1xf32>, vector<1x255xf32> -> vector<1x256xf32>
    %c0_21 = arith.constant 0 : index
    %c0_22 = arith.constant 0 : index
    %42 = vector.load %arg3[%c0_21, %c0_22] : memref<2x256xf32, #tpu.memory_space<vmem>>, vector<1x256xf32>
    %43 = arith.mulf %41, %42 : vector<1x256xf32>
    %44 = arith.addf %37, %43 : vector<1x256xf32>
    %45 = vector.extract_strided_slice %17 {offsets = [4, 0], sizes = [1, 256], strides = [1, 1]} : vector<9x256xf32> to vector<1x256xf32>
    %46 = arith.addf %44, %45 : vector<1x256xf32>
    %47 = vector.extract_strided_slice %17 {offsets = [5, 0], sizes = [1, 256], strides = [1, 1]} : vector<9x256xf32> to vector<1x256xf32>
    %cst_23 = arith.constant 0.000000e+00 : f32
    %48 = vector.broadcast %cst_23 : f32 to vector<1x1xf32>
    %49 = vector.extract_strided_slice %47 {offsets = [0, 1], sizes = [1, 255], strides = [1, 1]} : vector<1x256xf32> to vector<1x255xf32>
    %50 = tpu.concatenate %49, %48 in 1 : vector<1x255xf32>, vector<1x1xf32> -> vector<1x256xf32>
    %c1_24 = arith.constant 1 : index
    %c0_25 = arith.constant 0 : index
    %51 = vector.load %arg3[%c1_24, %c0_25] : memref<2x256xf32, #tpu.memory_space<vmem>>, vector<1x256xf32>
    %52 = arith.mulf %50, %51 : vector<1x256xf32>
    %53 = arith.addf %46, %52 : vector<1x256xf32>
    %54 = vector.extract_strided_slice %17 {offsets = [6, 0], sizes = [1, 256], strides = [1, 1]} : vector<9x256xf32> to vector<1x256xf32>
    %cst_26 = arith.constant 0.000000e+00 : f32
    %55 = vector.broadcast %cst_26 : f32 to vector<1x15xf32>
    %56 = vector.extract_strided_slice %54 {offsets = [0, 15], sizes = [1, 241], strides = [1, 1]} : vector<1x256xf32> to vector<1x241xf32>
    %57 = tpu.concatenate %56, %55 in 1 : vector<1x241xf32>, vector<1x15xf32> -> vector<1x256xf32>
    %c0_27 = arith.constant 0 : index
    %c0_28 = arith.constant 0 : index
    %58 = vector.load %arg3[%c0_27, %c0_28] : memref<2x256xf32, #tpu.memory_space<vmem>>, vector<1x256xf32>
    %59 = arith.mulf %57, %58 : vector<1x256xf32>
    %60 = arith.addf %53, %59 : vector<1x256xf32>
    %61 = vector.extract_strided_slice %17 {offsets = [7, 0], sizes = [1, 256], strides = [1, 1]} : vector<9x256xf32> to vector<1x256xf32>
    %cst_29 = arith.constant 0.000000e+00 : f32
    %62 = vector.broadcast %cst_29 : f32 to vector<1x16xf32>
    %63 = vector.extract_strided_slice %61 {offsets = [0, 16], sizes = [1, 240], strides = [1, 1]} : vector<1x256xf32> to vector<1x240xf32>
    %64 = tpu.concatenate %63, %62 in 1 : vector<1x240xf32>, vector<1x16xf32> -> vector<1x256xf32>
    %65 = arith.addf %60, %64 : vector<1x256xf32>
    %66 = vector.extract_strided_slice %17 {offsets = [8, 0], sizes = [1, 256], strides = [1, 1]} : vector<9x256xf32> to vector<1x256xf32>
    %cst_30 = arith.constant 0.000000e+00 : f32
    %67 = vector.broadcast %cst_30 : f32 to vector<1x17xf32>
    %68 = vector.extract_strided_slice %66 {offsets = [0, 17], sizes = [1, 239], strides = [1, 1]} : vector<1x256xf32> to vector<1x239xf32>
    %69 = tpu.concatenate %68, %67 in 1 : vector<1x239xf32>, vector<1x17xf32> -> vector<1x256xf32>
    %c1_31 = arith.constant 1 : index
    %c0_32 = arith.constant 0 : index
    %70 = vector.load %arg3[%c1_31, %c0_32] : memref<2x256xf32, #tpu.memory_space<vmem>>, vector<1x256xf32>
    %71 = arith.mulf %69, %70 : vector<1x256xf32>
    %72 = arith.addf %65, %71 : vector<1x256xf32>
    %cst_33 = arith.constant 0.000000e+00 : f32
    %73 = vector.broadcast %cst_33 : f32 to vector<1x256xf32>
    %74 = arith.cmpf ogt, %72, %73 : vector<1x256xf32>
    %cst_34 = arith.constant 0.00999999977 : f32
    %75 = vector.broadcast %cst_34 : f32 to vector<1x256xf32>
    %76 = arith.mulf %75, %72 : vector<1x256xf32>
    %77 = arith.select %74, %72, %76 : vector<1x256xi1>, vector<1x256xf32>
    %c0_35 = arith.constant 0 : index
    %78 = memref.load %arg8[%c0_35] : memref<1xf32, #tpu.memory_space<smem>>
    %79 = vector.broadcast %78 : f32 to vector<1x256xf32>
    %80 = arith.mulf %79, %77 : vector<1x256xf32>
    %cst_36 = arith.constant 0.000000e+00 : f32
    %81 = vector.broadcast %cst_36 : f32 to vector<1x256xf32>
    %82 = arith.cmpf ogt, %80, %81 : vector<1x256xf32>
    %cst_37 = arith.constant 0.00999999977 : f32
    %83 = vector.broadcast %cst_37 : f32 to vector<1x256xf32>
    %84 = arith.mulf %83, %80 : vector<1x256xf32>
    %85 = arith.select %82, %80, %84 : vector<1x256xi1>, vector<1x256xf32>
    %c0_38 = arith.constant 0 : index
    %c0_39 = arith.constant 0 : index
    %86 = vector.load %arg4[%c0_38, %c0_39] : memref<2x32xf32, #tpu.memory_space<vmem>>, vector<2x32xf32>
    %cst_40 = arith.constant dense<0.000000e+00> : vector<2x1xf32>
    %87 = tpu.matmul %86, %8, %cst_40 {dimension_numbers = #tpu.dot_dimension_numbers<[1], [0], [0], [1], [0, 0, 1, 1], [], []>} : vector<2x32xf32>, vector<32x1xf32>, vector<2x1xf32> -> vector<2x1xf32>
    %cst_41 = arith.constant 0.000000e+00 : f32
    %88 = vector.broadcast %cst_41 : f32 to vector<2x1xf32>
    %89 = arith.cmpf ogt, %87, %88 : vector<2x1xf32>
    %cst_42 = arith.constant 0.00999999977 : f32
    %90 = vector.broadcast %cst_42 : f32 to vector<2x1xf32>
    %91 = arith.mulf %90, %87 : vector<2x1xf32>
    %92 = arith.select %89, %87, %91 : vector<2x1xi1>, vector<2x1xf32>
    %c0_43 = arith.constant 0 : index
    %c0_44 = arith.constant 0 : index
    %93 = vector.load %arg5[%c0_43, %c0_44] : memref<32x2xf32, #tpu.memory_space<vmem>>, vector<32x2xf32>
    %cst_45 = arith.constant dense<0.000000e+00> : vector<32x1xf32>
    %94 = tpu.matmul %93, %92, %cst_45 {dimension_numbers = #tpu.dot_dimension_numbers<[1], [0], [0], [1], [0, 0, 1, 1], [], []>} : vector<32x2xf32>, vector<2x1xf32>, vector<32x1xf32> -> vector<32x1xf32>
    %cst_46 = arith.constant 0.000000e+00 : f32
    %95 = vector.broadcast %cst_46 : f32 to vector<32x1xf32>
    %96 = arith.cmpf ogt, %94, %95 : vector<32x1xf32>
    %cst_47 = arith.constant 0.00999999977 : f32
    %97 = vector.broadcast %cst_47 : f32 to vector<32x1xf32>
    %98 = arith.mulf %97, %94 : vector<32x1xf32>
    %99 = arith.select %96, %94, %98 : vector<32x1xi1>, vector<32x1xf32>
    %c0_48 = arith.constant 0 : index
    %c0_49 = arith.constant 0 : index
    %100 = vector.load %arg6[%c0_48, %c0_49] : memref<8x8xf32, #tpu.memory_space<vmem>>, vector<8x8xf32>
    %cst_50 = arith.constant dense<0.000000e+00> : vector<8x1xf32>
    %101 = tpu.matmul %100, %15, %cst_50 {dimension_numbers = #tpu.dot_dimension_numbers<[1], [0], [0], [1], [0, 0, 1, 1], [], []>} : vector<8x8xf32>, vector<8x1xf32>, vector<8x1xf32> -> vector<8x1xf32>
    %cst_51 = arith.constant 0.000000e+00 : f32
    %102 = vector.broadcast %cst_51 : f32 to vector<8x1xf32>
    %103 = arith.cmpf ogt, %101, %102 : vector<8x1xf32>
    %cst_52 = arith.constant 0.00999999977 : f32
    %104 = vector.broadcast %cst_52 : f32 to vector<8x1xf32>
    %105 = arith.mulf %104, %101 : vector<8x1xf32>
    %106 = arith.select %103, %101, %105 : vector<8x1xi1>, vector<8x1xf32>
    %c0_53 = arith.constant 0 : index
    %c0_54 = arith.constant 0 : index
    %107 = vector.load %arg7[%c0_53, %c0_54] : memref<8x8xf32, #tpu.memory_space<vmem>>, vector<8x8xf32>
    %cst_55 = arith.constant dense<0.000000e+00> : vector<8x1xf32>
    %108 = tpu.matmul %107, %106, %cst_55 {dimension_numbers = #tpu.dot_dimension_numbers<[1], [0], [0], [1], [0, 0, 1, 1], [], []>} : vector<8x8xf32>, vector<8x1xf32>, vector<8x1xf32> -> vector<8x1xf32>
    %cst_56 = arith.constant 0.000000e+00 : f32
    %109 = vector.broadcast %cst_56 : f32 to vector<8x1xf32>
    %110 = arith.cmpf ogt, %108, %109 : vector<8x1xf32>
    %cst_57 = arith.constant 0.00999999977 : f32
    %111 = vector.broadcast %cst_57 : f32 to vector<8x1xf32>
    %112 = arith.mulf %111, %108 : vector<8x1xf32>
    %113 = arith.select %110, %108, %112 : vector<8x1xi1>, vector<8x1xf32>
    %114 = vector.broadcast %99 : vector<32x1xf32> to vector<32x256xf32>
    %115 = vector.broadcast %85 : vector<1x256xf32> to vector<32x256xf32>
    %116 = arith.mulf %114, %115 : vector<32x256xf32>
    %117 = vector.extract_strided_slice %113 {offsets = [0, 0], sizes = [1, 1], strides = [1, 1]} : vector<8x1xf32> to vector<1x1xf32>
    %118 = vector.broadcast %117 : vector<1x1xf32> to vector<32x256xf32>
    %119 = arith.mulf %118, %116 : vector<32x256xf32>
    %c0_58 = arith.constant 0 : index
    %c0_59 = arith.constant 0 : index
    %c0_60 = arith.constant 0 : index
    %c0_61 = arith.constant 0 : index
    %120 = vector.load %arg1[%c0_58, %c0_59, %c0_60, %c0_61] : memref<1x8x32x256xf32, #tpu.memory_space<vmem>>, vector<1x1x32x256xf32>
    %121 = vector.shape_cast %120 : vector<1x1x32x256xf32> to vector<32x256xf32>
    %122 = arith.negf %119 : vector<32x256xf32>
    %123 = math.exp %122 : vector<32x256xf32>
    %cst_62 = arith.constant 1.000000e+00 : f32
    %124 = vector.broadcast %cst_62 : f32 to vector<32x256xf32>
    %125 = arith.addf %124, %123 : vector<32x256xf32>
    %126 = arith.divf %124, %125 : vector<32x256xf32>
    %cst_63 = arith.constant 5.000000e-01 : f32
    %127 = vector.broadcast %cst_63 : f32 to vector<32x256xf32>
    %128 = arith.addf %127, %126 : vector<32x256xf32>
    %129 = arith.mulf %121, %128 : vector<32x256xf32>
    %c0_64 = arith.constant 0 : index
    %c0_65 = arith.constant 0 : index
    %c0_66 = arith.constant 0 : index
    %c0_67 = arith.constant 0 : index
    %130 = vector.load %arg9[%c0_64, %c0_65, %c0_66, %c0_67] : memref<1x8x32x256xf32, #tpu.memory_space<vmem>>, vector<1x1x32x256xf32>
    %131 = vector.shape_cast %130 : vector<1x1x32x256xf32> to vector<32x256xf32>
    %132 = vector.shape_cast %129 : vector<32x256xf32> to vector<1x1x32x256xf32>
    tpu.vector_store %arg9[%c0_64, %c0_65, %c0_66, %c0_67], %132 {strides = array<i32>} : memref<1x8x32x256xf32, #tpu.memory_space<vmem>>, vector<1x1x32x256xf32>,
    %133 = vector.extract_strided_slice %113 {offsets = [1, 0], sizes = [1, 1], strides = [1, 1]} : vector<8x1xf32> to vector<1x1xf32>
    %134 = vector.broadcast %133 : vector<1x1xf32> to vector<32x256xf32>
    %135 = arith.mulf %134, %116 : vector<32x256xf32>
    %c0_68 = arith.constant 0 : index
    %c1_69 = arith.constant 1 : index
    %c0_70 = arith.constant 0 : index
    %c0_71 = arith.constant 0 : index
    %136 = vector.load %arg1[%c0_68, %c1_69, %c0_70, %c0_71] : memref<1x8x32x256xf32, #tpu.memory_space<vmem>>, vector<1x1x32x256xf32>
    %137 = vector.shape_cast %136 : vector<1x1x32x256xf32> to vector<32x256xf32>
    %138 = arith.negf %135 : vector<32x256xf32>
    %139 = math.exp %138 : vector<32x256xf32>
    %cst_72 = arith.constant 1.000000e+00 : f32
    %140 = vector.broadcast %cst_72 : f32 to vector<32x256xf32>
    %141 = arith.addf %140, %139 : vector<32x256xf32>
    %142 = arith.divf %140, %141 : vector<32x256xf32>
    %cst_73 = arith.constant 5.000000e-01 : f32
    %143 = vector.broadcast %cst_73 : f32 to vector<32x256xf32>
    %144 = arith.addf %143, %142 : vector<32x256xf32>
    %145 = arith.mulf %137, %144 : vector<32x256xf32>
    %c0_74 = arith.constant 0 : index
    %c1_75 = arith.constant 1 : index
    %c0_76 = arith.constant 0 : index
    %c0_77 = arith.constant 0 : index
    %146 = vector.load %arg9[%c0_74, %c1_75, %c0_76, %c0_77] : memref<1x8x32x256xf32, #tpu.memory_space<vmem>>, vector<1x1x32x256xf32>
    %147 = vector.shape_cast %146 : vector<1x1x32x256xf32> to vector<32x256xf32>
    %148 = vector.shape_cast %145 : vector<32x256xf32> to vector<1x1x32x256xf32>
    tpu.vector_store %arg9[%c0_74, %c1_75, %c0_76, %c0_77], %148 {strides = array<i32>} : memref<1x8x32x256xf32, #tpu.memory_space<vmem>>, vector<1x1x32x256xf32>,
    %149 = vector.extract_strided_slice %113 {offsets = [2, 0], sizes = [1, 1], strides = [1, 1]} : vector<8x1xf32> to vector<1x1xf32>
    %150 = vector.broadcast %149 : vector<1x1xf32> to vector<32x256xf32>
    %151 = arith.mulf %150, %116 : vector<32x256xf32>
    %c0_78 = arith.constant 0 : index
    %c2 = arith.constant 2 : index
    %c0_79 = arith.constant 0 : index
    %c0_80 = arith.constant 0 : index
    %152 = vector.load %arg1[%c0_78, %c2, %c0_79, %c0_80] : memref<1x8x32x256xf32, #tpu.memory_space<vmem>>, vector<1x1x32x256xf32>
    %153 = vector.shape_cast %152 : vector<1x1x32x256xf32> to vector<32x256xf32>
    %154 = arith.negf %151 : vector<32x256xf32>
    %155 = math.exp %154 : vector<32x256xf32>
    %cst_81 = arith.constant 1.000000e+00 : f32
    %156 = vector.broadcast %cst_81 : f32 to vector<32x256xf32>
    %157 = arith.addf %156, %155 : vector<32x256xf32>
    %158 = arith.divf %156, %157 : vector<32x256xf32>
    %cst_82 = arith.constant 5.000000e-01 : f32
    %159 = vector.broadcast %cst_82 : f32 to vector<32x256xf32>
    %160 = arith.addf %159, %158 : vector<32x256xf32>
    %161 = arith.mulf %153, %160 : vector<32x256xf32>
    %c0_83 = arith.constant 0 : index
    %c2_84 = arith.constant 2 : index
    %c0_85 = arith.constant 0 : index
    %c0_86 = arith.constant 0 : index
    %162 = vector.load %arg9[%c0_83, %c2_84, %c0_85, %c0_86] : memref<1x8x32x256xf32, #tpu.memory_space<vmem>>, vector<1x1x32x256xf32>
    %163 = vector.shape_cast %162 : vector<1x1x32x256xf32> to vector<32x256xf32>
    %164 = vector.shape_cast %161 : vector<32x256xf32> to vector<1x1x32x256xf32>
    tpu.vector_store %arg9[%c0_83, %c2_84, %c0_85, %c0_86], %164 {strides = array<i32>} : memref<1x8x32x256xf32, #tpu.memory_space<vmem>>, vector<1x1x32x256xf32>,
    %165 = vector.extract_strided_slice %113 {offsets = [3, 0], sizes = [1, 1], strides = [1, 1]} : vector<8x1xf32> to vector<1x1xf32>
    %166 = vector.broadcast %165 : vector<1x1xf32> to vector<32x256xf32>
    %167 = arith.mulf %166, %116 : vector<32x256xf32>
    %c0_87 = arith.constant 0 : index
    %c3 = arith.constant 3 : index
    %c0_88 = arith.constant 0 : index
    %c0_89 = arith.constant 0 : index
    %168 = vector.load %arg1[%c0_87, %c3, %c0_88, %c0_89] : memref<1x8x32x256xf32, #tpu.memory_space<vmem>>, vector<1x1x32x256xf32>
    %169 = vector.shape_cast %168 : vector<1x1x32x256xf32> to vector<32x256xf32>
    %170 = arith.negf %167 : vector<32x256xf32>
    %171 = math.exp %170 : vector<32x256xf32>
    %cst_90 = arith.constant 1.000000e+00 : f32
    %172 = vector.broadcast %cst_90 : f32 to vector<32x256xf32>
    %173 = arith.addf %172, %171 : vector<32x256xf32>
    %174 = arith.divf %172, %173 : vector<32x256xf32>
    %cst_91 = arith.constant 5.000000e-01 : f32
    %175 = vector.broadcast %cst_91 : f32 to vector<32x256xf32>
    %176 = arith.addf %175, %174 : vector<32x256xf32>
    %177 = arith.mulf %169, %176 : vector<32x256xf32>
    %c0_92 = arith.constant 0 : index
    %c3_93 = arith.constant 3 : index
    %c0_94 = arith.constant 0 : index
    %c0_95 = arith.constant 0 : index
    %178 = vector.load %arg9[%c0_92, %c3_93, %c0_94, %c0_95] : memref<1x8x32x256xf32, #tpu.memory_space<vmem>>, vector<1x1x32x256xf32>
    %179 = vector.shape_cast %178 : vector<1x1x32x256xf32> to vector<32x256xf32>
    %180 = vector.shape_cast %177 : vector<32x256xf32> to vector<1x1x32x256xf32>
    tpu.vector_store %arg9[%c0_92, %c3_93, %c0_94, %c0_95], %180 {strides = array<i32>} : memref<1x8x32x256xf32, #tpu.memory_space<vmem>>, vector<1x1x32x256xf32>,
    %181 = vector.extract_strided_slice %113 {offsets = [4, 0], sizes = [1, 1], strides = [1, 1]} : vector<8x1xf32> to vector<1x1xf32>
    %182 = vector.broadcast %181 : vector<1x1xf32> to vector<32x256xf32>
    %183 = arith.mulf %182, %116 : vector<32x256xf32>
    %c0_96 = arith.constant 0 : index
    %c4 = arith.constant 4 : index
    %c0_97 = arith.constant 0 : index
    %c0_98 = arith.constant 0 : index
    %184 = vector.load %arg1[%c0_96, %c4, %c0_97, %c0_98] : memref<1x8x32x256xf32, #tpu.memory_space<vmem>>, vector<1x1x32x256xf32>
    %185 = vector.shape_cast %184 : vector<1x1x32x256xf32> to vector<32x256xf32>
    %186 = arith.negf %183 : vector<32x256xf32>
    %187 = math.exp %186 : vector<32x256xf32>
    %cst_99 = arith.constant 1.000000e+00 : f32
    %188 = vector.broadcast %cst_99 : f32 to vector<32x256xf32>
    %189 = arith.addf %188, %187 : vector<32x256xf32>
    %190 = arith.divf %188, %189 : vector<32x256xf32>
    %cst_100 = arith.constant 5.000000e-01 : f32
    %191 = vector.broadcast %cst_100 : f32 to vector<32x256xf32>
    %192 = arith.addf %191, %190 : vector<32x256xf32>
    %193 = arith.mulf %185, %192 : vector<32x256xf32>
    %c0_101 = arith.constant 0 : index
    %c4_102 = arith.constant 4 : index
    %c0_103 = arith.constant 0 : index
    %c0_104 = arith.constant 0 : index
    %194 = vector.load %arg9[%c0_101, %c4_102, %c0_103, %c0_104] : memref<1x8x32x256xf32, #tpu.memory_space<vmem>>, vector<1x1x32x256xf32>
    %195 = vector.shape_cast %194 : vector<1x1x32x256xf32> to vector<32x256xf32>
    %196 = vector.shape_cast %193 : vector<32x256xf32> to vector<1x1x32x256xf32>
    tpu.vector_store %arg9[%c0_101, %c4_102, %c0_103, %c0_104], %196 {strides = array<i32>} : memref<1x8x32x256xf32, #tpu.memory_space<vmem>>, vector<1x1x32x256xf32>,
    %197 = vector.extract_strided_slice %113 {offsets = [5, 0], sizes = [1, 1], strides = [1, 1]} : vector<8x1xf32> to vector<1x1xf32>
    %198 = vector.broadcast %197 : vector<1x1xf32> to vector<32x256xf32>
    %199 = arith.mulf %198, %116 : vector<32x256xf32>
    %c0_105 = arith.constant 0 : index
    %c5 = arith.constant 5 : index
    %c0_106 = arith.constant 0 : index
    %c0_107 = arith.constant 0 : index
    %200 = vector.load %arg1[%c0_105, %c5, %c0_106, %c0_107] : memref<1x8x32x256xf32, #tpu.memory_space<vmem>>, vector<1x1x32x256xf32>
    %201 = vector.shape_cast %200 : vector<1x1x32x256xf32> to vector<32x256xf32>
    %202 = arith.negf %199 : vector<32x256xf32>
    %203 = math.exp %202 : vector<32x256xf32>
    %cst_108 = arith.constant 1.000000e+00 : f32
    %204 = vector.broadcast %cst_108 : f32 to vector<32x256xf32>
    %205 = arith.addf %204, %203 : vector<32x256xf32>
    %206 = arith.divf %204, %205 : vector<32x256xf32>
    %cst_109 = arith.constant 5.000000e-01 : f32
    %207 = vector.broadcast %cst_109 : f32 to vector<32x256xf32>
    %208 = arith.addf %207, %206 : vector<32x256xf32>
    %209 = arith.mulf %201, %208 : vector<32x256xf32>
    %c0_110 = arith.constant 0 : index
    %c5_111 = arith.constant 5 : index
    %c0_112 = arith.constant 0 : index
    %c0_113 = arith.constant 0 : index
    %210 = vector.load %arg9[%c0_110, %c5_111, %c0_112, %c0_113] : memref<1x8x32x256xf32, #tpu.memory_space<vmem>>, vector<1x1x32x256xf32>
    %211 = vector.shape_cast %210 : vector<1x1x32x256xf32> to vector<32x256xf32>
    %212 = vector.shape_cast %209 : vector<32x256xf32> to vector<1x1x32x256xf32>
    tpu.vector_store %arg9[%c0_110, %c5_111, %c0_112, %c0_113], %212 {strides = array<i32>} : memref<1x8x32x256xf32, #tpu.memory_space<vmem>>, vector<1x1x32x256xf32>,
    %213 = vector.extract_strided_slice %113 {offsets = [6, 0], sizes = [1, 1], strides = [1, 1]} : vector<8x1xf32> to vector<1x1xf32>
    %214 = vector.broadcast %213 : vector<1x1xf32> to vector<32x256xf32>
    %215 = arith.mulf %214, %116 : vector<32x256xf32>
    %c0_114 = arith.constant 0 : index
    %c6 = arith.constant 6 : index
    %c0_115 = arith.constant 0 : index
    %c0_116 = arith.constant 0 : index
    %216 = vector.load %arg1[%c0_114, %c6, %c0_115, %c0_116] : memref<1x8x32x256xf32, #tpu.memory_space<vmem>>, vector<1x1x32x256xf32>
    %217 = vector.shape_cast %216 : vector<1x1x32x256xf32> to vector<32x256xf32>
    %218 = arith.negf %215 : vector<32x256xf32>
    %219 = math.exp %218 : vector<32x256xf32>
    %cst_117 = arith.constant 1.000000e+00 : f32
    %220 = vector.broadcast %cst_117 : f32 to vector<32x256xf32>
    %221 = arith.addf %220, %219 : vector<32x256xf32>
    %222 = arith.divf %220, %221 : vector<32x256xf32>
    %cst_118 = arith.constant 5.000000e-01 : f32
    %223 = vector.broadcast %cst_118 : f32 to vector<32x256xf32>
    %224 = arith.addf %223, %222 : vector<32x256xf32>
    %225 = arith.mulf %217, %224 : vector<32x256xf32>
    %c0_119 = arith.constant 0 : index
    %c6_120 = arith.constant 6 : index
    %c0_121 = arith.constant 0 : index
    %c0_122 = arith.constant 0 : index
    %226 = vector.load %arg9[%c0_119, %c6_120, %c0_121, %c0_122] : memref<1x8x32x256xf32, #tpu.memory_space<vmem>>, vector<1x1x32x256xf32>
    %227 = vector.shape_cast %226 : vector<1x1x32x256xf32> to vector<32x256xf32>
    %228 = vector.shape_cast %225 : vector<32x256xf32> to vector<1x1x32x256xf32>
    tpu.vector_store %arg9[%c0_119, %c6_120, %c0_121, %c0_122], %228 {strides = array<i32>} : memref<1x8x32x256xf32, #tpu.memory_space<vmem>>, vector<1x1x32x256xf32>,
    %229 = vector.extract_strided_slice %113 {offsets = [7, 0], sizes = [1, 1], strides = [1, 1]} : vector<8x1xf32> to vector<1x1xf32>
    %230 = vector.broadcast %229 : vector<1x1xf32> to vector<32x256xf32>
    %231 = arith.mulf %230, %116 : vector<32x256xf32>
    %c0_123 = arith.constant 0 : index
    %c7 = arith.constant 7 : index
    %c0_124 = arith.constant 0 : index
    %c0_125 = arith.constant 0 : index
    %232 = vector.load %arg1[%c0_123, %c7, %c0_124, %c0_125] : memref<1x8x32x256xf32, #tpu.memory_space<vmem>>, vector<1x1x32x256xf32>
    %233 = vector.shape_cast %232 : vector<1x1x32x256xf32> to vector<32x256xf32>
    %234 = arith.negf %231 : vector<32x256xf32>
    %235 = math.exp %234 : vector<32x256xf32>
    %cst_126 = arith.constant 1.000000e+00 : f32
    %236 = vector.broadcast %cst_126 : f32 to vector<32x256xf32>
    %237 = arith.addf %236, %235 : vector<32x256xf32>
    %238 = arith.divf %236, %237 : vector<32x256xf32>
    %cst_127 = arith.constant 5.000000e-01 : f32
    %239 = vector.broadcast %cst_127 : f32 to vector<32x256xf32>
    %240 = arith.addf %239, %238 : vector<32x256xf32>
    %241 = arith.mulf %233, %240 : vector<32x256xf32>
    %c0_128 = arith.constant 0 : index
    %c7_129 = arith.constant 7 : index
    %c0_130 = arith.constant 0 : index
    %c0_131 = arith.constant 0 : index
    %242 = vector.load %arg9[%c0_128, %c7_129, %c0_130, %c0_131] : memref<1x8x32x256xf32, #tpu.memory_space<vmem>>, vector<1x1x32x256xf32>
    %243 = vector.shape_cast %242 : vector<1x1x32x256xf32> to vector<32x256xf32>
    %244 = vector.shape_cast %241 : vector<32x256xf32> to vector<1x1x32x256xf32>
    tpu.vector_store %arg9[%c0_128, %c7_129, %c0_130, %c0_131], %244 {strides = array<i32>} : memref<1x8x32x256xf32, #tpu.memory_space<vmem>>, vector<1x1x32x256xf32>,
    return
  }
  func.func @transform_0(%arg0: i32) -> (i32, i32, i32, i32) {
    %c0_i32 = arith.constant 0 : i32
    %c0_i32_0 = arith.constant 0 : i32
    %c0_i32_1 = arith.constant 0 : i32
    %c0_i32_2 = arith.constant 0 : i32
    return %arg0, %c0_i32, %c0_i32_0, %c0_i32_1 : i32, i32, i32, i32
  }
  func.func @transform_1(%arg0: i32) -> (i32, i32) {
    %c0_i32 = arith.constant 0 : i32
    %c0_i32_0 = arith.constant 0 : i32
    %c0_i32_1 = arith.constant 0 : i32
    return %c0_i32, %c0_i32_0 : i32, i32
  }
  func.func @transform_2(%arg0: i32) -> (i32, i32) {
    %c0_i32 = arith.constant 0 : i32
    %c0_i32_0 = arith.constant 0 : i32
    %c0_i32_1 = arith.constant 0 : i32
    return %c0_i32, %c0_i32_0 : i32, i32
  }
  func.func @transform_3(%arg0: i32) -> (i32, i32) {
    %c0_i32 = arith.constant 0 : i32
    %c0_i32_0 = arith.constant 0 : i32
    %c0_i32_1 = arith.constant 0 : i32
    return %c0_i32, %c0_i32_0 : i32, i32
  }
  func.func @transform_4(%arg0: i32) -> (i32, i32) {
    %c0_i32 = arith.constant 0 : i32
    %c0_i32_0 = arith.constant 0 : i32
    %c0_i32_1 = arith.constant 0 : i32
    return %c0_i32, %c0_i32_0 : i32, i32
  }
  func.func @transform_5(%arg0: i32) -> (i32, i32) {
    %c0_i32 = arith.constant 0 : i32
    %c0_i32_0 = arith.constant 0 : i32
    %c0_i32_1 = arith.constant 0 : i32
    return %c0_i32, %c0_i32_0 : i32, i32
  }
  func.func @transform_6(%arg0: i32) -> (i32, i32) {
    %c0_i32 = arith.constant 0 : i32
    %c0_i32_0 = arith.constant 0 : i32
    %c0_i32_1 = arith.constant 0 : i32
    return %c0_i32, %c0_i32_0 : i32, i32
  }
  func.func @transform_7(%arg0: i32) -> i32 {
    %c0_i32 = arith.constant 0 : i32
    %c0_i32_0 = arith.constant 0 : i32
    return %c0_i32 : i32
  }
  func.func @transform_8(%arg0: i32) -> (i32, i32, i32, i32) {
    %c0_i32 = arith.constant 0 : i32
    %c0_i32_0 = arith.constant 0 : i32
    %c0_i32_1 = arith.constant 0 : i32
    %c0_i32_2 = arith.constant 0 : i32
    return %arg0, %c0_i32, %c0_i32_0, %c0_i32_1 : i32, i32, i32, i32
  }
}

</mosaic_0001>

<llo_original>
// kernel: ral_forward.1
$region0: #{ral_forward.1}
  #allocation0 [shape = 'u32[]', space=smem, size = 0x4, offset = 0x4, fixed_abs, tag = 'smem constant byte address 0x4 - core index']
  #allocation1 [shape = 'u32[144,128]{1,0:T(1,128)}', space=vmem, size = 0x12000, scoped, tag = 'internal scratch']
  #allocation2 [shape = 'f32[1]{0:T(128)S(6)}', space=smem, size = 0x200, scoped, tag = 'scoped memory for ral_forward.1']
  %s0 = inlined_call_operand.vmem [shape: f32[2,8,32,256], index: 0, kind: input, shape index: {}]
  %s1 = inlined_call_operand.vmem [shape: f32[9,32], index: 1, kind: input, shape index: {}]
  %s2 = inlined_call_operand.vmem [shape: f32[2,256], index: 2, kind: input, shape index: {}]
  %s3 = inlined_call_operand.vmem [shape: f32[2,32], index: 3, kind: input, shape index: {}]
  %s4 = inlined_call_operand.vmem [shape: f32[32,2], index: 4, kind: input, shape index: {}]
  %s5 = inlined_call_operand.vmem [shape: f32[8,8], index: 5, kind: input, shape index: {}]
  %s6 = inlined_call_operand.vmem [shape: f32[8,8], index: 6, kind: input, shape index: {}]
  %s7 = inlined_call_operand.<no memory space> [shape: f32[1], index: 7, kind: input, shape index: {}]
  %s8 = inlined_call_operand.vmem [shape: f32[2,8,32,256], index: 8, kind: output, shape index: {}]
  %s9 = sld [smem:[#allocation0]]
  $region65: #{ral_forward.1} parent=0
    _
  %s11 = ssub.s32 1, %s9
  %s12 = scalar_select 0, %s11, %s9
  %13 = sst [smem:[#allocation2]] %s7
  loop: start=0, step=1, limit=4
  $region2: #{ral_forward.1} parent=0 // loop_pre_header
    _
  $region3: #{ral_forward.1} parent=0 // loop_header
    %s15 = sphi 0, %s19
    %p16 = scmp.ge.s32.totalorder %s15, 4
    %s25 = sphi 0, %s27
    %s28 = sphi 0, %s25
    %s29 = sphi 0, %s28
    %s45 = sphi 0, %s29
    %s49 = sphi 0, %s49
    %s51 = sphi 0, %s49
    %s52 = sphi 0, %s51
    %s66 = sphi 0, %s52
    %s70 = sphi 0, %s70
    %s72 = sphi 0, %s70
    %s73 = sphi 0, %s72
    %s87 = sphi 0, %s73
    %s91 = sphi 0, %s91
    %s93 = sphi 0, %s91
    %s94 = sphi 0, %s93
    %s108 = sphi 0, %s94
    %s112 = sphi 0, %s112
    %s114 = sphi 0, %s112
    %s115 = sphi 0, %s114
    %s129 = sphi 0, %s115
    %s133 = sphi 0, %s133
    %s135 = sphi 0, %s133
    %s136 = sphi 0, %s135
    %s150 = sphi 0, %s136
    %s154 = sphi 0, %s154
    %s156 = sphi 0, %s154
    %s157 = sphi 0, %s156
    %s171 = sphi 0, %s157
    %s175 = sphi 0, %s175
    %s177 = sphi 0, %s175
    %s178 = sphi 0, %s177
    %s192 = sphi 0, %s178
    %s198 = sphi 0, %s200
    %s201 = sphi 0, %s198
    %s202 = sphi 0, %s201
    %s218 = sphi 0, %s202
  $region4: #{ral_forward.1} parent=0 // loop_header_branch
    %18 = sbr.rel (%p16) target = $region8
  $region5: #{ral_forward.1} parent=0 // loop_body
    %s20 = ssub.s32 %s15, 1
    %s21 = ssub.s32 %s15, 2
    %s22 = sadd.s32 %s15, 1
    %s23 = ssub.s32 %s15, %s22
    %p24 = scmp.eq.s32.totalorder %s23, 0
    %s26 = sadd.s32 %s25, 1
    %s27 = scalar_select %p24, %s25, %s26
    %p30 = pneg %p24
    %p31 = scmp.eq.s32.totalorder %s15, 1
    %p32 = por %p30, %p31
    %p33 = scmp.ne.s32.totalorder %s25, %s28
    %p34 = scmp.eq.s32.totalorder %s15, 0
    %p35 = por %p33, %p34
    %p36 = scmp.ne.s32.totalorder %s25, %s28
    %p37 = scmp.eq.s32.totalorder %s20, 1
    %p38 = por %p36, %p37
    %p39 = scmp.ne.s32.totalorder %s28, %s29
    %p40 = scmp.eq.s32.totalorder %s20, 0
    %p41 = por %p39, %p40
    %p42 = scmp.ne.s32.totalorder %s28, %s29
    %p43 = scmp.eq.s32.totalorder %s21, 1
    %p44 = por %p42, %p43
    %p46 = scmp.ne.s32.totalorder %s29, %s45
    %p47 = scmp.eq.s32.totalorder %s21, 0
    %p48 = por %p46, %p47
    %s50 = sadd.s32 %s49, 1
    %p53 = scmp.eq.s32.totalorder %s15, 1
    %p54 = scmp.ne.s32.totalorder %s49, %s51
    %p55 = scmp.eq.s32.totalorder %s15, 0
    %p56 = por %p54, %p55
    %p57 = scmp.ne.s32.totalorder %s49, %s51
    %p58 = scmp.eq.s32.totalorder %s20, 1
    %p59 = por %p57, %p58
    %p60 = scmp.ne.s32.totalorder %s51, %s52
    %p61 = scmp.eq.s32.totalorder %s20, 0
    %p62 = por %p60, %p61
    %p63 = scmp.ne.s32.totalorder %s51, %s52
    %p64 = scmp.eq.s32.totalorder %s21, 1
    %p65 = por %p63, %p64
    %p67 = scmp.ne.s32.totalorder %s52, %s66
    %p68 = scmp.eq.s32.totalorder %s21, 0
    %p69 = por %p67, %p68
    %s71 = sadd.s32 %s70, 1
    %p74 = scmp.eq.s32.totalorder %s15, 1
    %p75 = scmp.ne.s32.totalorder %s70, %s72
    %p76 = scmp.eq.s32.totalorder %s15, 0
    %p77 = por %p75, %p76
    %p78 = scmp.ne.s32.totalorder %s70, %s72
    %p79 = scmp.eq.s32.totalorder %s20, 1
    %p80 = por %p78, %p79
    %p81 = scmp.ne.s32.totalorder %s72, %s73
    %p82 = scmp.eq.s32.totalorder %s20, 0
    %p83 = por %p81, %p82
    %p84 = scmp.ne.s32.totalorder %s72, %s73
    %p85 = scmp.eq.s32.totalorder %s21, 1
    %p86 = por %p84, %p85
    %p88 = scmp.ne.s32.totalorder %s73, %s87
    %p89 = scmp.eq.s32.totalorder %s21, 0
    %p90 = por %p88, %p89
    %s92 = sadd.s32 %s91, 1
    %p95 = scmp.eq.s32.totalorder %s15, 1
    %p96 = scmp.ne.s32.totalorder %s91, %s93
    %p97 = scmp.eq.s32.totalorder %s15, 0
    %p98 = por %p96, %p97
    %p99 = scmp.ne.s32.totalorder %s91, %s93
    %p100 = scmp.eq.s32.totalorder %s20, 1
    %p101 = por %p99, %p100
    %p102 = scmp.ne.s32.totalorder %s93, %s94
    %p103 = scmp.eq.s32.totalorder %s20, 0
    %p104 = por %p102, %p103
    %p105 = scmp.ne.s32.totalorder %s93, %s94
    %p106 = scmp.eq.s32.totalorder %s21, 1
    %p107 = por %p105, %p106
    %p109 = scmp.ne.s32.totalorder %s94, %s108
    %p110 = scmp.eq.s32.totalorder %s21, 0
    %p111 = por %p109, %p110
    %s113 = sadd.s32 %s112, 1
    %p116 = scmp.eq.s32.totalorder %s15, 1
    %p117 = scmp.ne.s32.totalorder %s112, %s114
    %p118 = scmp.eq.s32.totalorder %s15, 0
    %p119 = por %p117, %p118
    %p120 = scmp.ne.s32.totalorder %s112, %s114
    %p121 = scmp.eq.s32.totalorder %s20, 1
    %p122 = por %p120, %p121
    %p123 = scmp.ne.s32.totalorder %s114, %s115
    %p124 = scmp.eq.s32.totalorder %s20, 0
    %p125 = por %p123, %p124
    %p126 = scmp.ne.s32.totalorder %s114, %s115
    %p127 = scmp.eq.s32.totalorder %s21, 1
    %p128 = por %p126, %p127
    %p130 = scmp.ne.s32.totalorder %s115, %s129
    %p131 = scmp.eq.s32.totalorder %s21, 0
    %p132 = por %p130, %p131
    %s134 = sadd.s32 %s133, 1
    %p137 = scmp.eq.s32.totalorder %s15, 1
    %p138 = scmp.ne.s32.totalorder %s133, %s135
    %p139 = scmp.eq.s32.totalorder %s15, 0
    %p140 = por %p138, %p139
    %p141 = scmp.ne.s32.totalorder %s133, %s135
    %p142 = scmp.eq.s32.totalorder %s20, 1
    %p143 = por %p141, %p142
    %p144 = scmp.ne.s32.totalorder %s135, %s136
    %p145 = scmp.eq.s32.totalorder %s20, 0
    %p146 = por %p144, %p145
    %p147 = scmp.ne.s32.totalorder %s135, %s136
    %p148 = scmp.eq.s32.totalorder %s21, 1
    %p149 = por %p147, %p148
    %p151 = scmp.ne.s32.totalorder %s136, %s150
    %p152 = scmp.eq.s32.totalorder %s21, 0
    %p153 = por %p151, %p152
    %s155 = sadd.s32 %s154, 1
    %p158 = scmp.eq.s32.totalorder %s15, 1
    %p159 = scmp.ne.s32.totalorder %s154, %s156
    %p160 = scmp.eq.s32.totalorder %s15, 0
    %p161 = por %p159, %p160
    %p162 = scmp.ne.s32.totalorder %s154, %s156
    %p163 = scmp.eq.s32.totalorder %s20, 1
    %p164 = por %p162, %p163
    %p165 = scmp.ne.s32.totalorder %s156, %s157
    %p166 = scmp.eq.s32.totalorder %s20, 0
    %p167 = por %p165, %p166
    %p168 = scmp.ne.s32.totalorder %s156, %s157
    %p169 = scmp.eq.s32.totalorder %s21, 1
    %p170 = por %p168, %p169
    %p172 = scmp.ne.s32.totalorder %s157, %s171
    %p173 = scmp.eq.s32.totalorder %s21, 0
    %p174 = por %p172, %p173
    %s176 = sadd.s32 %s175, 1
    %p179 = scmp.eq.s32.totalorder %s15, 1
    %p180 = scmp.ne.s32.totalorder %s175, %s177
    %p181 = scmp.eq.s32.totalorder %s15, 0
    %p182 = por %p180, %p181
    %p183 = scmp.ne.s32.totalorder %s175, %s177
    %p184 = scmp.eq.s32.totalorder %s20, 1
    %p185 = por %p183, %p184
    %p186 = scmp.ne.s32.totalorder %s177, %s178
    %p187 = scmp.eq.s32.totalorder %s20, 0
    %p188 = por %p186, %p187
    %p189 = scmp.ne.s32.totalorder %s177, %s178
    %p190 = scmp.eq.s32.totalorder %s21, 1
    %p191 = por %p189, %p190
    %p193 = scmp.ne.s32.totalorder %s178, %s192
    %p194 = scmp.eq.s32.totalorder %s21, 0
    %p195 = por %p193, %p194
    %s196 = ssub.s32 %s15, %s22
    %p197 = scmp.eq.s32.totalorder %s196, 0
    %s199 = sadd.s32 %s198, 1
    %s200 = scalar_select %p197, %s198, %s199
    %p203 = pneg %p197
    %p204 = scmp.eq.s32.totalorder %s15, 1
    %p205 = por %p203, %p204
    %p206 = scmp.ne.s32.totalorder %s198, %s201
    %p207 = scmp.eq.s32.totalorder %s15, 0
    %p208 = por %p206, %p207
    %p209 = scmp.ne.s32.totalorder %s198, %s201
    %p210 = scmp.eq.s32.totalorder %s20, 1
    %p211 = por %p209, %p210
    %p212 = scmp.ne.s32.totalorder %s201, %s202
    %p213 = scmp.eq.s32.totalorder %s20, 0
    %p214 = por %p212, %p213
    %p215 = scmp.ne.s32.totalorder %s201, %s202
    %p216 = scmp.eq.s32.totalorder %s21, 1
    %p217 = por %p215, %p216
    %p219 = scmp.ne.s32.totalorder %s202, %s218
    %p220 = scmp.eq.s32.totalorder %s21, 0
    %p221 = por %p219, %p220
    %p222 = scmp.le.s32.totalorder 1, %s15
    %p223 = scmp.lt.s32.totalorder %s15, 3
    %p224 = pnand %p222, %p223
    %p225 = pneg %p224
    // Predicated region
    $region9: #{ral_forward.1} parent=5 // pred_check
      _
    $region10: #{ral_forward.1} parent=5 // pred_check_branch
      %227 = sbr.rel (%p224) target = $region12
    $region11: #{ral_forward.1} parent=5 // pred_region
      %s228 = ssub.s32 %s15, 1
      // Predicated region
      $region13: #{ral_forward.1} parent=11 // pred_check
        %p229 = pneg %p62
      $region14: #{ral_forward.1} parent=11 // pred_check_branch
        %231 = sbr.rel (%p229) target = $region16
      $region15: #{ral_forward.1} parent=11 // pred_region
        _
      $region16: #{ral_forward.1} parent=11 // pred_fallthru
        _
      // Predicated region
      $region17: #{ral_forward.1} parent=11 // pred_check
        %p232 = pneg %p83
      $region18: #{ral_forward.1} parent=11 // pred_check_branch
        %234 = sbr.rel (%p232) target = $region20
      $region19: #{ral_forward.1} parent=11 // pred_region
        _
      $region20: #{ral_forward.1} parent=11 // pred_fallthru
        _
      // Predicated region
      $region21: #{ral_forward.1} parent=11 // pred_check
        %p235 = pneg %p104
      $region22: #{ral_forward.1} parent=11 // pred_check_branch
        %237 = sbr.rel (%p235) target = $region24
      $region23: #{ral_forward.1} parent=11 // pred_region
        _
      $region24: #{ral_forward.1} parent=11 // pred_fallthru
        _
      // Predicated region
      $region25: #{ral_forward.1} parent=11 // pred_check
        %p238 = pneg %p125
      $region26: #{ral_forward.1} parent=11 // pred_check_branch
        %240 = sbr.rel (%p238) target = $region28
      $region27: #{ral_forward.1} parent=11 // pred_region
        _
      $region28: #{ral_forward.1} parent=11 // pred_fallthru
        _
      // Predicated region
      $region29: #{ral_forward.1} parent=11 // pred_check
        %p241 = pneg %p146
      $region30: #{ral_forward.1} parent=11 // pred_check_branch
        %243 = sbr.rel (%p241) target = $region32
      $region31: #{ral_forward.1} parent=11 // pred_region
        _
      $region32: #{ral_forward.1} parent=11 // pred_fallthru
        _
      // Predicated region
      $region33: #{ral_forward.1} parent=11 // pred_check
        %p244 = pneg %p167
      $region34: #{ral_forward.1} parent=11 // pred_check_branch
        %246 = sbr.rel (%p244) target = $region36
      $region35: #{ral_forward.1} parent=11 // pred_region
        _
      $region36: #{ral_forward.1} parent=11 // pred_fallthru
        _
      // Predicated region
      $region37: #{ral_forward.1} parent=11 // pred_check
        %p247 = pneg %p188
      $region38: #{ral_forward.1} parent=11 // pred_check_branch
        %249 = sbr.rel (%p247) target = $region40
      $region39: #{ral_forward.1} parent=11 // pred_region
        _
      $region40: #{ral_forward.1} parent=11 // pred_fallthru
        _
    $region12: #{ral_forward.1} parent=5 // pred_fallthru
      _
    %p250 = scmp.lt.s32.totalorder %s15, 2
    // Predicated region
    $region41: #{ral_forward.1} parent=5 // pred_check
      %p251 = pneg %p250
    $region42: #{ral_forward.1} parent=5 // pred_check_branch
      %253 = sbr.rel (%p251) target = $region44
    $region43: #{ral_forward.1} parent=5 // pred_region
      // Predicated region
      $region45: #{ral_forward.1} parent=43 // pred_check
        %p254 = pneg %p35
      $region46: #{ral_forward.1} parent=43 // pred_check_branch
        %256 = sbr.rel (%p254) target = $region48
      $region47: #{ral_forward.1} parent=43 // pred_region
        %p257 = scmp.lt.s32.totalorder %s15, 1
        %s258 = scalar_select %p257, %s15, 1
        %s259 = smul.addr %s258, 64
        %s260 = smul.addr %s259, 8
        %s261 = scalar_lea.vmem %s0, %s260
      $region48: #{ral_forward.1} parent=43 // pred_fallthru
        _
    $region44: #{ral_forward.1} parent=5 // pred_fallthru
      _
    %p262 = scmp.le.s32.totalorder 1, %s15
    %p263 = scmp.lt.s32.totalorder %s15, 3
    %p264 = pnand %p262, %p263
    %p265 = pneg %p264
    // Predicated region
    $region49: #{ral_forward.1} parent=5 // pred_check
      _
    $region50: #{ral_forward.1} parent=5 // pred_check_branch
      %267 = sbr.rel (%p264) target = $region52
    $region51: #{ral_forward.1} parent=5 // pred_region
      %s268 = ssub.s32 %s15, 1
      %p269 = scmp.lt.s32.totalorder %s20, 1
      %s270 = scalar_select %p269, %s20, 1
      %s271 = smul.addr %s270, 64
      %s272 = smul.addr %s271, 8
      %s273 = scalar_lea.vmem %s0, %s272
      %p274 = pneg %p41
      %p275 = pneg %p38
      %p276 = pneg %p62
      %p277 = pneg %p59
      %p278 = pneg %p83
      %p279 = pneg %p80
      %p280 = pneg %p104
      %p281 = pneg %p101
      %p282 = pneg %p125
      %p283 = pneg %p122
      %p284 = pneg %p146
      %p285 = pneg %p143
      %p286 = pneg %p167
      %p287 = pneg %p164
      %p288 = pneg %p188
      %p289 = pneg %p185
      %p290 = pneg %p214
      %p291 = pneg %p211
      %p292 = scmp.lt.s32.totalorder %s20, 1
      %s293 = scalar_select %p292, %s20, 1
      %s294 = smul.addr %s293, 64
      %s295 = smul.addr %s294, 8
      %s296 = scalar_lea.vmem %s8, %s295
      %p297 = scmp.lt.s32.totalorder %s20, 1
      %s298 = scalar_select %p297, %s20, 1
      %s299 = smul.addr %s298, 64
      %s300 = smul.addr %s299, 8
      %s301 = scalar_lea.vmem %s0, %s300
      %p302 = scmp.lt.s32.totalorder %s20, 1
      %s303 = scalar_select %p302, %s20, 1
      %s304 = smul.addr %s303, 64
      %s305 = smul.addr %s304, 8
      %s306 = scalar_lea.vmem %s8, %s305
      %v307 = vld [vmem:[%s301] sm:$0xff]
      %v308 = vld [vmem:[%s301 + $0x8] sm:$0xff]
      %v309 = vld [vmem:[%s301 + $0x10] sm:$0xff]
      %v310 = vld [vmem:[%s301 + $0x18] sm:$0xff]
      %v311 = vld [vmem:[%s301 + $0x20] sm:$0xff]
      %v312 = vld [vmem:[%s301 + $0x28] sm:$0xff]
      %v313 = vld [vmem:[%s301 + $0x30] sm:$0xff]
      %v314 = vld [vmem:[%s301 + $0x38] sm:$0xff]
      %v315 = vld [vmem:[%s301 + $0x40] sm:$0xff]
      %v316 = vld [vmem:[%s301 + $0x48] sm:$0xff]
      %v317 = vld [vmem:[%s301 + $0x50] sm:$0xff]
      %v318 = vld [vmem:[%s301 + $0x58] sm:$0xff]
      %v319 = vld [vmem:[%s301 + $0x60] sm:$0xff]
      %v320 = vld [vmem:[%s301 + $0x68] sm:$0xff]
      %v321 = vld [vmem:[%s301 + $0x70] sm:$0xff]
      %v322 = vld [vmem:[%s301 + $0x78] sm:$0xff]
      %v323 = vld [vmem:[%s301 + $0x80] sm:$0xff]
      %v324 = vld [vmem:[%s301 + $0x88] sm:$0xff]
      %v325 = vld [vmem:[%s301 + $0x90] sm:$0xff]
      %v326 = vld [vmem:[%s301 + $0x98] sm:$0xff]
      %v327 = vld [vmem:[%s301 + $0xa0] sm:$0xff]
      %v328 = vld [vmem:[%s301 + $0xa8] sm:$0xff]
      %v329 = vld [vmem:[%s301 + $0xb0] sm:$0xff]
      %v330 = vld [vmem:[%s301 + $0xb8] sm:$0xff]
      %v331 = vld [vmem:[%s301 + $0xc0] sm:$0xff]
      %v332 = vld [vmem:[%s301 + $0xc8] sm:$0xff]
      %v333 = vld [vmem:[%s301 + $0xd0] sm:$0xff]
      %v334 = vld [vmem:[%s301 + $0xd8] sm:$0xff]
      %v335 = vld [vmem:[%s301 + $0xe0] sm:$0xff]
      %v336 = vld [vmem:[%s301 + $0xe8] sm:$0xff]
      %v337 = vld [vmem:[%s301 + $0xf0] sm:$0xff]
      %v338 = vld [vmem:[%s301 + $0xf8] sm:$0xff]
      %v339 = vld [vmem:[%s301 + $0x100] sm:$0xff]
      %v340 = vld [vmem:[%s301 + $0x108] sm:$0xff]
      %v341 = vld [vmem:[%s301 + $0x110] sm:$0xff]
      %v342 = vld [vmem:[%s301 + $0x118] sm:$0xff]
      %v343 = vld [vmem:[%s301 + $0x120] sm:$0xff]
      %v344 = vld [vmem:[%s301 + $0x128] sm:$0xff]
      %v345 = vld [vmem:[%s301 + $0x130] sm:$0xff]
      %v346 = vld [vmem:[%s301 + $0x138] sm:$0xff]
      %v347 = vld [vmem:[%s301 + $0x140] sm:$0xff]
      %v348 = vld [vmem:[%s301 + $0x148] sm:$0xff]
      %v349 = vld [vmem:[%s301 + $0x150] sm:$0xff]
      %v350 = vld [vmem:[%s301 + $0x158] sm:$0xff]
      %v351 = vld [vmem:[%s301 + $0x160] sm:$0xff]
      %v352 = vld [vmem:[%s301 + $0x168] sm:$0xff]
      %v353 = vld [vmem:[%s301 + $0x170] sm:$0xff]
      %v354 = vld [vmem:[%s301 + $0x178] sm:$0xff]
      %v355 = vld [vmem:[%s301 + $0x180] sm:$0xff]
      %v356 = vld [vmem:[%s301 + $0x188] sm:$0xff]
      %v357 = vld [vmem:[%s301 + $0x190] sm:$0xff]
      %v358 = vld [vmem:[%s301 + $0x198] sm:$0xff]
      %v359 = vld [vmem:[%s301 + $0x1a0] sm:$0xff]
      %v360 = vld [vmem:[%s301 + $0x1a8] sm:$0xff]
      %v361 = vld [vmem:[%s301 + $0x1b0] sm:$0xff]
      %v362 = vld [vmem:[%s301 + $0x1b8] sm:$0xff]
      %v363 = vld [vmem:[%s301 + $0x1c0] sm:$0xff]
      %v364 = vld [vmem:[%s301 + $0x1c8] sm:$0xff]
      %v365 = vld [vmem:[%s301 + $0x1d0] sm:$0xff]
      %v366 = vld [vmem:[%s301 + $0x1d8] sm:$0xff]
      %v367 = vld [vmem:[%s301 + $0x1e0] sm:$0xff]
      %v368 = vld [vmem:[%s301 + $0x1e8] sm:$0xff]
      %v369 = vld [vmem:[%s301 + $0x1f0] sm:$0xff]
      %v370 = vld [vmem:[%s301 + $0x1f8] sm:$0xff]
      %v371 = vadd.f32 %v307, %v315
      %v372 = vadd.f32 %v371, %v323
      %v373 = vadd.f32 %v372, %v331
      %v374 = vadd.f32 %v373, %v339
      %v375 = vadd.f32 %v374, %v347
      %v376 = vadd.f32 %v375, %v355
      %v377 = vadd.f32 %v376, %v363
      %v378 = vadd.f32 %v308, %v316
      %v379 = vadd.f32 %v378, %v324
      %v380 = vadd.f32 %v379, %v332
      %v381 = vadd.f32 %v380, %v340
      %v382 = vadd.f32 %v381, %v348
      %v383 = vadd.f32 %v382, %v356
      %v384 = vadd.f32 %v383, %v364
      %v385 = vadd.f32 %v309, %v317
      %v386 = vadd.f32 %v385, %v325
      %v387 = vadd.f32 %v386, %v333
      %v388 = vadd.f32 %v387, %v341
      %v389 = vadd.f32 %v388, %v349
      %v390 = vadd.f32 %v389, %v357
      %v391 = vadd.f32 %v390, %v365
      %v392 = vadd.f32 %v310, %v318
      %v393 = vadd.f32 %v392, %v326
      %v394 = vadd.f32 %v393, %v334
      %v395 = vadd.f32 %v394, %v342
      %v396 = vadd.f32 %v395, %v350
      %v397 = vadd.f32 %v396, %v358
      %v398 = vadd.f32 %v397, %v366
      %v399 = vadd.f32 %v311, %v319
      %v400 = vadd.f32 %v399, %v327
      %v401 = vadd.f32 %v400, %v335
      %v402 = vadd.f32 %v401, %v343
      %v403 = vadd.f32 %v402, %v351
      %v404 = vadd.f32 %v403, %v359
      %v405 = vadd.f32 %v404, %v367
      %v406 = vadd.f32 %v312, %v320
      %v407 = vadd.f32 %v406, %v328
      %v408 = vadd.f32 %v407, %v336
      %v409 = vadd.f32 %v408, %v344
      %v410 = vadd.f32 %v409, %v352
      %v411 = vadd.f32 %v410, %v360
      %v412 = vadd.f32 %v411, %v368
      %v413 = vadd.f32 %v313, %v321
      %v414 = vadd.f32 %v413, %v329
      %v415 = vadd.f32 %v414, %v337
      %v416 = vadd.f32 %v415, %v345
      %v417 = vadd.f32 %v416, %v353
      %v418 = vadd.f32 %v417, %v361
      %v419 = vadd.f32 %v418, %v369
      %v420 = vadd.f32 %v314, %v322
      %v421 = vadd.f32 %v420, %v330
      %v422 = vadd.f32 %v421, %v338
      %v423 = vadd.f32 %v422, %v346
      %v424 = vadd.f32 %v423, %v354
      %v425 = vadd.f32 %v424, %v362
      %v426 = vadd.f32 %v425, %v370
      %v427 = vrcp.pop 8.0
      %v428 = vmul.f32 %v377, %v427
      %v429 = vmul.f32 %v384, %v427
      %v430 = vmul.f32 %v391, %v427
      %v431 = vmul.f32 %v398, %v427
      %v432 = vmul.f32 %v405, %v427
      %v433 = vmul.f32 %v412, %v427
      %v434 = vmul.f32 %v419, %v427
      %v435 = vmul.f32 %v426, %v427
      %v436 = vadd.f32 %v428, %v429
      %437 = vadd.xlane.f32.xlu0 %v436
      %v438 = vpop.xlane.xlu0 %437
      %v439 = vadd.f32 %v430, %v431
      %440 = vadd.xlane.f32.xlu0 %v439
      %v441 = vpop.xlane.xlu0 %440
      %v442 = vadd.f32 %v432, %v433
      %443 = vadd.xlane.f32.xlu0 %v442
      %v444 = vpop.xlane.xlu0 %443
      %v445 = vadd.f32 %v434, %v435
      %446 = vadd.xlane.f32.xlu0 %v445
      %v447 = vpop.xlane.xlu0 %446
      %v448 = vrcp.pop 256.0
      %v449 = vmul.f32 %v438, %v448
      %v450 = vmul.f32 %v441, %v448
      %v451 = vmul.f32 %v444, %v448
      %v452 = vmul.f32 %v447, %v448
      %v453 = vadd.f32 %v307, %v309
      %v454 = vadd.f32 %v453, %v311
      %v455 = vadd.f32 %v454, %v313
      %v456 = vrot.slane %v455, 4
      %v457 = vadd.f32 %v455, %v456
      %v458 = vrot.slane %v457, 2
      %v459 = vadd.f32 %v457, %v458
      %v460 = vrot.slane %v459, 1
      %v461 = vadd.f32 %v459, %v460
      %v462 = vadd.f32 %v308, %v310
      %v463 = vadd.f32 %v462, %v312
      %v464 = vadd.f32 %v463, %v314
      %v465 = vrot.slane %v464, 4
      %v466 = vadd.f32 %v464, %v465
      %v467 = vrot.slane %v466, 2
      %v468 = vadd.f32 %v466, %v467
      %v469 = vrot.slane %v468, 1
      %v470 = vadd.f32 %v468, %v469
      %v471 = vadd.f32 %v315, %v317
      %v472 = vadd.f32 %v471, %v319
      %v473 = vadd.f32 %v472, %v321
      %v474 = vrot.slane %v473, 4
      %v475 = vadd.f32 %v473, %v474
      %v476 = vrot.slane %v475, 2
      %v477 = vadd.f32 %v475, %v476
      %v478 = vrot.slane %v477, 1
      %v479 = vadd.f32 %v477, %v478
      %v480 = vadd.f32 %v316, %v318
      %v481 = vadd.f32 %v480, %v320
      %v482 = vadd.f32 %v481, %v322
      %v483 = vrot.slane %v482, 4
      %v484 = vadd.f32 %v482, %v483
      %v485 = vrot.slane %v484, 2
      %v486 = vadd.f32 %v484, %v485
      %v487 = vrot.slane %v486, 1
      %v488 = vadd.f32 %v486, %v487
      %v489 = vadd.f32 %v323, %v325
      %v490 = vadd.f32 %v489, %v327
      %v491 = vadd.f32 %v490, %v329
      %v492 = vrot.slane %v491, 4
      %v493 = vadd.f32 %v491, %v492
      %v494 = vrot.slane %v493, 2
      %v495 = vadd.f32 %v493, %v494
      %v496 = vrot.slane %v495, 1
      %v497 = vadd.f32 %v495, %v496
      %v498 = vadd.f32 %v324, %v326
      %v499 = vadd.f32 %v498, %v328
      %v500 = vadd.f32 %v499, %v330
      %v501 = vrot.slane %v500, 4
      %v502 = vadd.f32 %v500, %v501
      %v503 = vrot.slane %v502, 2
      %v504 = vadd.f32 %v502, %v503
      %v505 = vrot.slane %v504, 1
      %v506 = vadd.f32 %v504, %v505
      %v507 = vadd.f32 %v331, %v333
      %v508 = vadd.f32 %v507, %v335
      %v509 = vadd.f32 %v508, %v337
      %v510 = vrot.slane %v509, 4
      %v511 = vadd.f32 %v509, %v510
      %v512 = vrot.slane %v511, 2
      %v513 = vadd.f32 %v511, %v512
      %v514 = vrot.slane %v513, 1
      %v515 = vadd.f32 %v513, %v514
      %v516 = vadd.f32 %v332, %v334
      %v517 = vadd.f32 %v516, %v336
      %v518 = vadd.f32 %v517, %v338
      %v519 = vrot.slane %v518, 4
      %v520 = vadd.f32 %v518, %v519
      %v521 = vrot.slane %v520, 2
      %v522 = vadd.f32 %v520, %v521
      %v523 = vrot.slane %v522, 1
      %v524 = vadd.f32 %v522, %v523
      %v525 = vadd.f32 %v339, %v341
      %v526 = vadd.f32 %v525, %v343
      %v527 = vadd.f32 %v526, %v345
      %v528 = vrot.slane %v527, 4
      %v529 = vadd.f32 %v527, %v528
      %v530 = vrot.slane %v529, 2
      %v531 = vadd.f32 %v529, %v530
      %v532 = vrot.slane %v531, 1
      %v533 = vadd.f32 %v531, %v532
      %v534 = vadd.f32 %v340, %v342
      %v535 = vadd.f32 %v534, %v344
      %v536 = vadd.f32 %v535, %v346
      %v537 = vrot.slane %v536, 4
      %v538 = vadd.f32 %v536, %v537
      %v539 = vrot.slane %v538, 2
      %v540 = vadd.f32 %v538, %v539
      %v541 = vrot.slane %v540, 1
      %v542 = vadd.f32 %v540, %v541
      %v543 = vadd.f32 %v347, %v349
      %v544 = vadd.f32 %v543, %v351
      %v545 = vadd.f32 %v544, %v353
      %v546 = vrot.slane %v545, 4
      %v547 = vadd.f32 %v545, %v546
      %v548 = vrot.slane %v547, 2
      %v549 = vadd.f32 %v547, %v548
      %v550 = vrot.slane %v549, 1
      %v551 = vadd.f32 %v549, %v550
      %v552 = vadd.f32 %v348, %v350
      %v553 = vadd.f32 %v552, %v352
      %v554 = vadd.f32 %v553, %v354
      %v555 = vrot.slane %v554, 4
      %v556 = vadd.f32 %v554, %v555
      %v557 = vrot.slane %v556, 2
      %v558 = vadd.f32 %v556, %v557
      %v559 = vrot.slane %v558, 1
      %v560 = vadd.f32 %v558, %v559
      %v561 = vadd.f32 %v355, %v357
      %v562 = vadd.f32 %v561, %v359
      %v563 = vadd.f32 %v562, %v361
      %v564 = vrot.slane %v563, 4
      %v565 = vadd.f32 %v563, %v564
      %v566 = vrot.slane %v565, 2
      %v567 = vadd.f32 %v565, %v566
      %v568 = vrot.slane %v567, 1
      %v569 = vadd.f32 %v567, %v568
      %v570 = vadd.f32 %v356, %v358
      %v571 = vadd.f32 %v570, %v360
      %v572 = vadd.f32 %v571, %v362
      %v573 = vrot.slane %v572, 4
      %v574 = vadd.f32 %v572, %v573
      %v575 = vrot.slane %v574, 2
      %v576 = vadd.f32 %v574, %v575
      %v577 = vrot.slane %v576, 1
      %v578 = vadd.f32 %v576, %v577
      %v579 = vadd.f32 %v363, %v365
      %v580 = vadd.f32 %v579, %v367
      %v581 = vadd.f32 %v580, %v369
      %v582 = vrot.slane %v581, 4
      %v583 = vadd.f32 %v581, %v582
      %v584 = vrot.slane %v583, 2
      %v585 = vadd.f32 %v583, %v584
      %v586 = vrot.slane %v585, 1
      %v587 = vadd.f32 %v585, %v586
      %v588 = vadd.f32 %v364, %v366
      %v589 = vadd.f32 %v588, %v368
      %v590 = vadd.f32 %v589, %v370
      %v591 = vrot.slane %v590, 4
      %v592 = vadd.f32 %v590, %v591
      %v593 = vrot.slane %v592, 2
      %v594 = vadd.f32 %v592, %v593
      %v595 = vrot.slane %v594, 1
      %v596 = vadd.f32 %v594, %v595
      %v597 = vrcp.pop 32.0
      %v598 = vmul.f32 %v461, %v597
      %v599 = vmul.f32 %v470, %v597
      %v600 = vmul.f32 %v479, %v597
      %v601 = vmul.f32 %v488, %v597
      %v602 = vmul.f32 %v497, %v597
      %v603 = vmul.f32 %v506, %v597
      %v604 = vmul.f32 %v515, %v597
      %v605 = vmul.f32 %v524, %v597
      %v606 = vmul.f32 %v533, %v597
      %v607 = vmul.f32 %v542, %v597
      %v608 = vmul.f32 %v551, %v597
      %v609 = vmul.f32 %v560, %v597
      %v610 = vmul.f32 %v569, %v597
      %v611 = vmul.f32 %v578, %v597
      %v612 = vmul.f32 %v587, %v597
      %v613 = vmul.f32 %v596, %v597
      %vm630 = vcmask 1041409
      %v631 = vsel %vm630, %v600, %v598
      %vm632 = vcmask 1042434
      %v633 = vsel %vm632, %v602, %v631
      %vm634 = vcmask 1043459
      %v635 = vsel %vm634, %v604, %v633
      %vm636 = vcmask 1044484
      %v637 = vsel %vm636, %v606, %v635
      %vm638 = vcmask 1045509
      %v639 = vsel %vm638, %v608, %v637
      %vm640 = vcmask 1046534
      %v641 = vsel %vm640, %v610, %v639
      %vm642 = vcmask 1047559
      %v643 = vsel %vm642, %v612, %v641
      %v644 = vsel %vm630, %v601, %v599
      %v645 = vsel %vm632, %v603, %v644
      %v646 = vsel %vm634, %v605, %v645
      %v647 = vsel %vm636, %v607, %v646
      %v648 = vsel %vm638, %v609, %v647
      %v649 = vsel %vm640, %v611, %v648
      %v650 = vsel %vm642, %v613, %v649
      %v653 = vadd.f32 %v643, %v650
      %654 = vadd.xlane.f32.xlu0 %v653
      %v655 = vpop.xlane.xlu0 %654
      %v656 = vmul.f32 %v655, %v448
      %v657 = vld [vmem:[%s1] sm:$0xff]
      %v658 = vld [vmem:[%s1 + $0x8] sm:$0x1]
      %vm659 = vcmask 261120
      %v661 = vsel %vm659, %v657, 0
      %v664 = vsel %vm659, %v658, 0
      %666 = vmatprep.subr.mxu0 0.0
      %667 = vmatpush1.msra.mxu0 0.0
      %668 = vmatprep.subr.mxu0 0.0
      %669 = vmatpush1.msra.mxu0 0.0
      %670 = vmatprep.subr.mxu0 0.0
      %671 = vmatpush1.msra.mxu0 0.0
      %672 = vmatprep.subr.mxu0 0.0
      %673 = vmatpush1.msra.mxu0 0.0
      %674 = vmatprep.subr.mxu0 0.0
      %675 = vmatpush1.msra.mxu0 0.0
      %676 = vmatprep.subr.mxu0 0.0
      %677 = vmatpush1.msra.mxu0 0.0
      %678 = vmatprep.subr.mxu0 0.0
      %679 = vmatpush1.msra.mxu0 0.0
      %680 = vmatprep.subr.mxu0 0.0
      %681 = vmatpush1.msra.mxu0 0.0
      %682 = vmatprep.subr.mxu0 0.0
      %683 = vmatpush1.msra.mxu0 0.0
      %684 = vmatprep.subr.mxu0 0.0
      %685 = vmatpush1.msra.mxu0 0.0
      %686 = vmatprep.subr.mxu0 0.0
      %687 = vmatpush1.msra.mxu0 0.0
      %688 = vmatprep.subr.mxu0 0.0
      %689 = vmatpush1.msra.mxu0 0.0
      %690 = vmatprep.subr.mxu0 %v435
      %691 = vmatpush1.msra.mxu0 %v434
      %692 = vmatprep.subr.mxu0 %v433
      %693 = vmatpush1.msra.mxu0 %v432
      %694 = vmatprep.subr.mxu0 %v431
      %695 = vmatpush1.msra.mxu0 %v430
      %696 = vmatprep.subr.mxu0 %v429
      %697 = vmatpush1.msra.mxu0 %v428
      %698 = vmatprep.subr.mxu0 0.0
      %699 = vmatpush2.msra.mxu0 0.0
      %700 = vmatprep.subr.mxu0 0.0
      %701 = vmatpush2.msra.mxu0 0.0
      %702 = vmatprep.subr.mxu0 0.0
      %703 = vmatpush2.msra.mxu0 0.0
      %704 = vmatprep.subr.mxu0 0.0
      %705 = vmatpush2.msra.mxu0 0.0
      %706 = vmatprep.subr.mxu0 0.0
      %707 = vmatpush2.msra.mxu0 0.0
      %708 = vmatprep.subr.mxu0 0.0
      %709 = vmatpush2.msra.mxu0 0.0
      %710 = vmatprep.subr.mxu0 0.0
      %711 = vmatpush2.msra.mxu0 0.0
      %712 = vmatprep.subr.mxu0 0.0
      %713 = vmatpush2.msra.mxu0 0.0
      %714 = vmatprep.subr.mxu0 0.0
      %715 = vmatpush2.msra.mxu0 0.0
      %716 = vmatprep.subr.mxu0 0.0
      %717 = vmatpush2.msra.mxu0 0.0
      %718 = vmatprep.subr.mxu0 0.0
      %719 = vmatpush2.msra.mxu0 0.0
      %720 = vmatprep.subr.mxu0 0.0
      %721 = vmatpush2.msra.mxu0 0.0
      %722 = vmatprep.subr.mxu0 0.0
      %723 = vmatpush2.msra.mxu0 0.0
      %724 = vmatprep.subr.mxu0 0.0
      %725 = vmatpush2.msra.mxu0 0.0
      %726 = vmatprep.subr.mxu0 0.0
      %727 = vmatpush2.msra.mxu0 0.0
      %728 = vmatprep.subr.mxu0 0.0
      %729 = vmatpush2.msra.mxu0 0.0
      %730 = vmatprep.mubr.f32.mxu0 0.0
      %731 = vmatmul.mubr.f32.gmra.mxu0 %v661
      %v732 = vpop.f32.mrf.mxu0
      %v733 = vadd.f32 0.0, %v732
      %v734 = vpop.f32.mrf.mxu0
      %v735 = vadd.f32 0.0, %v734
      %736 = vmatprep.mubr.f32.mxu0 0.0
      %737 = vmatmul.mubr.f32.gmra.mxu0 %v664
      %v738 = vpop.f32.mrf.mxu0
      %v739 = vadd.f32 0.0, %v738
      %v740 = vpop.f32.mrf.mxu0
      %v741 = vadd.f32 0.0, %v740
      %742 = vdwg.mxu0
      %745 = vrot.lane.b32.xlu0 %v733, 17
      %v746 = vpop.permute.xlu0 %745
      %747 = vrot.lane.b32.xlu0 %v735, 17
      %v748 = vpop.permute.xlu0 %747
      %vm749 = vcmask 138240
      %v750 = vsel %vm749, %v746, %v748
      %v753 = vsel %vm749, 0.0, %v746
      %v754 = vld [vmem:[%s2] ss:$2 sm:$0x3]
      %v756 = vlaneseq
      %v757 = vshrl.u32 %v756, 7
      %v758 = vsub.s32 0, %v757
      %v759 = vrot.slane %v754, %v758
      %v760 = vlaneseq
      %v761 = vshrl.u32 %v760, 7
      %v762 = vsub.s32 1, %v761
      %v763 = vrot.slane %v754, %v762
      %v766 = vmul.f32 %v753, %v759
      %v767 = vmul.f32 %v750, %v763
      %v768 = vadd.f32 %v766, 0.0
      %v769 = vadd.f32 %v767, 0.0
      %v770 = vrot.slane %v733, 1
      %v771 = vrot.slane %v735, 1
      %772 = vrot.lane.b32.xlu0 %v770, 16
      %v773 = vpop.permute.xlu0 %772
      %774 = vrot.lane.b32.xlu0 %v771, 16
      %v775 = vpop.permute.xlu0 %774
      %vm776 = vcmask 130048
      %v777 = vsel %vm776, %v773, %v775
      %v780 = vsel %vm776, 0.0, %v773
      %v781 = vadd.f32 %v768, %v780
      %v782 = vadd.f32 %v769, %v777
      %v783 = vrot.slane %v733, 2
      %v784 = vrot.slane %v735, 2
      %785 = vrot.lane.b32.xlu0 %v783, 15
      %v786 = vpop.permute.xlu0 %785
      %787 = vrot.lane.b32.xlu0 %v784, 15
      %v788 = vpop.permute.xlu0 %787
      %vm789 = vcmask 121856
      %v790 = vsel %vm789, %v786, %v788
      %v793 = vsel %vm789, 0.0, %v786
      %s794 = scalar_lea.vmem %s2, 1
      %v795 = vld [vmem:[%s794] ss:$2 sm:$0x3]
      %v797 = vlaneseq
      %v798 = vshrl.u32 %v797, 7
      %v799 = vsub.s32 0, %v798
      %v800 = vrot.slane %v795, %v799
      %v801 = vlaneseq
      %v802 = vshrl.u32 %v801, 7
      %v803 = vsub.s32 1, %v802
      %v804 = vrot.slane %v795, %v803
      %v807 = vmul.f32 %v793, %v800
      %v808 = vmul.f32 %v790, %v804
      %v809 = vadd.f32 %v781, %v807
      %v810 = vadd.f32 %v782, %v808
      %v811 = vrot.slane %v733, 3
      %v812 = vrot.slane %v735, 3
      %813 = vrot.lane.b32.xlu0 %v811, 1
      %v814 = vpop.permute.xlu0 %813
      %815 = vrot.lane.b32.xlu0 %v812, 1
      %v816 = vpop.permute.xlu0 %815
      %vm817 = vcmask 7168
      %v818 = vsel %vm817, %v814, %v816
      %v821 = vsel %vm817, 0.0, %v814
      %v822 = vmul.f32 %v821, %v759
      %v823 = vmul.f32 %v818, %v763
      %v824 = vadd.f32 %v809, %v822
      %v825 = vadd.f32 %v810, %v823
      %v826 = vrot.slane %v733, 4
      %v827 = vrot.slane %v735, 4
      %v830 = vadd.f32 %v824, %v826
      %v831 = vadd.f32 %v825, %v827
      %832 = vrot.lane.b32.xlu0 %v733, 127
      %v833 = vpop.permute.xlu0 %832
      %834 = vrot.lane.b32.xlu0 %v735, 127
      %v835 = vpop.permute.xlu0 %834
      %vm836 = vcmask 1039360
      %v837 = vsel %vm836, %v833, %v835
      %v840 = vsel %vm836, %v835, 0.0
      %v841 = vmul.f32 %v837, %v800
      %v842 = vmul.f32 %v840, %v804
      %v845 = vrot.slane %v841, 5
      %v846 = vrot.slane %v842, 5
      %v849 = vadd.f32 %v830, %v845
      %v850 = vadd.f32 %v831, %v846
      %851 = vrot.lane.b32.xlu0 %v733, 113
      %v852 = vpop.permute.xlu0 %851
      %853 = vrot.lane.b32.xlu0 %v735, 113
      %v854 = vpop.permute.xlu0 %853
      %vm855 = vcmask 924672
      %v856 = vsel %vm855, %v852, %v854
      %v859 = vsel %vm855, %v854, 0.0
      %v860 = vmul.f32 %v856, %v759
      %v861 = vmul.f32 %v859, %v763
      %v864 = vrot.slane %v860, 6
      %v865 = vrot.slane %v861, 6
      %v868 = vadd.f32 %v849, %v864
      %v869 = vadd.f32 %v850, %v865
      %870 = vrot.lane.b32.xlu0 %v733, 112
      %v871 = vpop.permute.xlu0 %870
      %872 = vrot.lane.b32.xlu0 %v735, 112
      %v873 = vpop.permute.xlu0 %872
      %vm874 = vcmask 916480
      %v875 = vsel %vm874, %v871, %v873
      %v877 = vsel %vm874, %v873, 0.0
      %v879 = vrot.slane %v875, 7
      %v880 = vrot.slane %v877, 7
      %v883 = vadd.f32 %v868, %v879
      %v884 = vadd.f32 %v869, %v880
      %887 = vrot.lane.b32.xlu0 %v739, 111
      %v888 = vpop.permute.xlu0 %887
      %889 = vrot.lane.b32.xlu0 %v741, 111
      %v890 = vpop.permute.xlu0 %889
      %vm891 = vcmask 908288
      %v892 = vsel %vm891, %v888, %v890
      %v895 = vsel %vm891, %v890, 0.0
      %v896 = vmul.f32 %v892, %v800
      %v897 = vmul.f32 %v895, %v804
      %v898 = vadd.f32 %v883, %v896
      %v899 = vadd.f32 %v884, %v897
      %vm900 = vcmp.gt.f32.partialorder %v898, 0.0
      %vm901 = vcmp.gt.f32.partialorder %v899, 0.0
      %v902 = vmul.f32 %v898, 0.01
      %v903 = vmul.f32 %v899, 0.01
      %v904 = vsel %vm900, %v898, %v902
      %v905 = vsel %vm901, %v899, %v903
      %s906 = sld [smem:[#allocation2]]
      %v907 = vstv %s906
      %v908 = vmul.f32 %v907, %v904
      %v909 = vmul.f32 %v907, %v905
      %vm910 = vcmp.gt.f32.partialorder %v908, 0.0
      %vm911 = vcmp.gt.f32.partialorder %v909, 0.0
      %v912 = vmul.f32 %v908, 0.01
      %v913 = vmul.f32 %v909, 0.01
      %v914 = vsel %vm910, %v908, %v912
      %v915 = vsel %vm911, %v909, %v913
      %v916 = vld [vmem:[%s3] sm:$0x3]
      %v918 = vsel %vm659, %v916, 0
      %920 = vmatprep.subr.mxu0 0.0
      %921 = vmatpush1.msra.mxu0 0.0
      %922 = vmatprep.subr.mxu0 0.0
      %923 = vmatpush1.msra.mxu0 0.0
      %924 = vmatprep.subr.mxu0 0.0
      %925 = vmatpush1.msra.mxu0 0.0
      %926 = vmatprep.subr.mxu0 0.0
      %927 = vmatpush1.msra.mxu0 0.0
      %928 = vmatprep.subr.mxu0 0.0
      %929 = vmatpush1.msra.mxu0 0.0
      %930 = vmatprep.subr.mxu0 0.0
      %931 = vmatpush1.msra.mxu0 0.0
      %932 = vmatprep.subr.mxu0 0.0
      %933 = vmatpush1.msra.mxu0 0.0
      %934 = vmatprep.subr.mxu0 0.0
      %935 = vmatpush1.msra.mxu0 0.0
      %936 = vmatprep.subr.mxu0 0.0
      %937 = vmatpush1.msra.mxu0 0.0
      %938 = vmatprep.subr.mxu0 0.0
      %939 = vmatpush1.msra.mxu0 0.0
      %940 = vmatprep.subr.mxu0 0.0
      %941 = vmatpush1.msra.mxu0 0.0
      %942 = vmatprep.subr.mxu0 0.0
      %943 = vmatpush1.msra.mxu0 0.0
      %944 = vmatprep.subr.mxu0 0.0
      %945 = vmatpush1.msra.mxu0 %v452
      %946 = vmatprep.subr.mxu0 0.0
      %947 = vmatpush1.msra.mxu0 %v451
      %948 = vmatprep.subr.mxu0 0.0
      %949 = vmatpush1.msra.mxu0 %v450
      %950 = vmatprep.subr.mxu0 0.0
      %951 = vmatpush1.msra.mxu0 %v449
      %952 = vmatprep.subr.mxu0 0.0
      %953 = vmatpush2.msra.mxu0 0.0
      %954 = vmatprep.subr.mxu0 0.0
      %955 = vmatpush2.msra.mxu0 0.0
      %956 = vmatprep.subr.mxu0 0.0
      %957 = vmatpush2.msra.mxu0 0.0
      %958 = vmatprep.subr.mxu0 0.0
      %959 = vmatpush2.msra.mxu0 0.0
      %960 = vmatprep.subr.mxu0 0.0
      %961 = vmatpush2.msra.mxu0 0.0
      %962 = vmatprep.subr.mxu0 0.0
      %963 = vmatpush2.msra.mxu0 0.0
      %964 = vmatprep.subr.mxu0 0.0
      %965 = vmatpush2.msra.mxu0 0.0
      %966 = vmatprep.subr.mxu0 0.0
      %967 = vmatpush2.msra.mxu0 0.0
      %968 = vmatprep.subr.mxu0 0.0
      %969 = vmatpush2.msra.mxu0 0.0
      %970 = vmatprep.subr.mxu0 0.0
      %971 = vmatpush2.msra.mxu0 0.0
      %972 = vmatprep.subr.mxu0 0.0
      %973 = vmatpush2.msra.mxu0 0.0
      %974 = vmatprep.subr.mxu0 0.0
      %975 = vmatpush2.msra.mxu0 0.0
      %976 = vmatprep.subr.mxu0 0.0
      %977 = vmatpush2.msra.mxu0 0.0
      %978 = vmatprep.subr.mxu0 0.0
      %979 = vmatpush2.msra.mxu0 0.0
      %980 = vmatprep.subr.mxu0 0.0
      %981 = vmatpush2.msra.mxu0 0.0
      %982 = vmatprep.subr.mxu0 0.0
      %983 = vmatpush2.msra.mxu0 0.0
      %984 = vmatprep.mubr.f32.mxu0 0.0
      %985 = vmatmul.mubr.f32.gmra.mxu0 %v918
      %v986 = vpop.f32.mrf.mxu0
      %v987 = vadd.f32 0.0, %v986
      %v988 = vpop.f32.mrf.mxu0
      %989 = vdwg.mxu0
      %vm990 = vcmp.gt.f32.partialorder %v987, 0.0
      %v991 = vmul.f32 %v987, 0.01
      %v992 = vsel %vm990, %v987, %v991
      %v993 = vld [vmem:[%s4] sm:$0xff]
      %v994 = vld [vmem:[%s4 + $0x8] sm:$0xff]
      %v995 = vld [vmem:[%s4 + $0x10] sm:$0xff]
      %v996 = vld [vmem:[%s4 + $0x18] sm:$0xff]
      %vm997 = vcmask 15360
      %v999 = vsel %vm997, %v993, 0
      %v1002 = vsel %vm997, %v994, 0
      %v1005 = vsel %vm997, %v995, 0
      %v1008 = vsel %vm997, %v996, 0
      %vm1010 = vcmask 1041408
      %v1012 = vsel %vm1010, %v992, 0
      %1014 = vmatprep.subr.mxu0 0.0
      %1015 = vmatpush1.msra.mxu0 0.0
      %1016 = vmatprep.subr.mxu0 0.0
      %1017 = vmatpush1.msra.mxu0 0.0
      %1018 = vmatprep.subr.mxu0 0.0
      %1019 = vmatpush1.msra.mxu0 0.0
      %1020 = vmatprep.subr.mxu0 0.0
      %1021 = vmatpush1.msra.mxu0 0.0
      %1022 = vmatprep.subr.mxu0 0.0
      %1023 = vmatpush1.msra.mxu0 0.0
      %1024 = vmatprep.subr.mxu0 0.0
      %1025 = vmatpush1.msra.mxu0 0.0
      %1026 = vmatprep.subr.mxu0 0.0
      %1027 = vmatpush1.msra.mxu0 0.0
      %1028 = vmatprep.subr.mxu0 0.0
      %1029 = vmatpush1.msra.mxu0 0.0
      %1030 = vmatprep.subr.mxu0 0.0
      %1031 = vmatpush1.msra.mxu0 0.0
      %1032 = vmatprep.subr.mxu0 0.0
      %1033 = vmatpush1.msra.mxu0 0.0
      %1034 = vmatprep.subr.mxu0 0.0
      %1035 = vmatpush1.msra.mxu0 0.0
      %1036 = vmatprep.subr.mxu0 0.0
      %1037 = vmatpush1.msra.mxu0 0.0
      %1038 = vmatprep.subr.mxu0 0.0
      %1039 = vmatpush1.msra.mxu0 0.0
      %1040 = vmatprep.subr.mxu0 0.0
      %1041 = vmatpush1.msra.mxu0 0.0
      %1042 = vmatprep.subr.mxu0 0.0
      %1043 = vmatpush1.msra.mxu0 0.0
      %1044 = vmatprep.subr.mxu0 0.0
      %1045 = vmatpush1.msra.mxu0 %v1012
      %1046 = vmatprep.subr.mxu0 0.0
      %1047 = vmatpush2.msra.mxu0 0.0
      %1048 = vmatprep.subr.mxu0 0.0
      %1049 = vmatpush2.msra.mxu0 0.0
      %1050 = vmatprep.subr.mxu0 0.0
      %1051 = vmatpush2.msra.mxu0 0.0
      %1052 = vmatprep.subr.mxu0 0.0
      %1053 = vmatpush2.msra.mxu0 0.0
      %1054 = vmatprep.subr.mxu0 0.0
      %1055 = vmatpush2.msra.mxu0 0.0
      %1056 = vmatprep.subr.mxu0 0.0
      %1057 = vmatpush2.msra.mxu0 0.0
      %1058 = vmatprep.subr.mxu0 0.0
      %1059 = vmatpush2.msra.mxu0 0.0
      %1060 = vmatprep.subr.mxu0 0.0
      %1061 = vmatpush2.msra.mxu0 0.0
      %1062 = vmatprep.subr.mxu0 0.0
      %1063 = vmatpush2.msra.mxu0 0.0
      %1064 = vmatprep.subr.mxu0 0.0
      %1065 = vmatpush2.msra.mxu0 0.0
      %1066 = vmatprep.subr.mxu0 0.0
      %1067 = vmatpush2.msra.mxu0 0.0
      %1068 = vmatprep.subr.mxu0 0.0
      %1069 = vmatpush2.msra.mxu0 0.0
      %1070 = vmatprep.subr.mxu0 0.0
      %1071 = vmatpush2.msra.mxu0 0.0
      %1072 = vmatprep.subr.mxu0 0.0
      %1073 = vmatpush2.msra.mxu0 0.0
      %1074 = vmatprep.subr.mxu0 0.0
      %1075 = vmatpush2.msra.mxu0 0.0
      %1076 = vmatprep.subr.mxu0 0.0
      %1077 = vmatpush2.msra.mxu0 0.0
      %1078 = vmatprep.mubr.f32.mxu0 0.0
      %1079 = vmatmul.mubr.f32.gmra.mxu0 %v999
      %v1080 = vpop.f32.mrf.mxu0
      %v1081 = vadd.f32 0.0, %v1080
      %v1082 = vpop.f32.mrf.mxu0
      %1083 = vmatprep.mubr.f32.mxu0 0.0
      %1084 = vmatmul.mubr.f32.gmra.mxu0 %v1002
      %v1085 = vpop.f32.mrf.mxu0
      %v1086 = vadd.f32 0.0, %v1085
      %v1087 = vpop.f32.mrf.mxu0
      %1088 = vmatprep.mubr.f32.mxu0 0.0
      %1089 = vmatmul.mubr.f32.gmra.mxu0 %v1005
      %v1090 = vpop.f32.mrf.mxu0
      %v1091 = vadd.f32 0.0, %v1090
      %v1092 = vpop.f32.mrf.mxu0
      %1093 = vmatprep.mubr.f32.mxu0 0.0
      %1094 = vmatmul.mubr.f32.gmra.mxu0 %v1008
      %v1095 = vpop.f32.mrf.mxu0
      %v1096 = vadd.f32 0.0, %v1095
      %v1097 = vpop.f32.mrf.mxu0
      %1098 = vdwg.mxu0
      %vm1099 = vcmp.gt.f32.partialorder %v1081, 0.0
      %vm1100 = vcmp.gt.f32.partialorder %v1086, 0.0
      %vm1101 = vcmp.gt.f32.partialorder %v1091, 0.0
      %vm1102 = vcmp.gt.f32.partialorder %v1096, 0.0
      %v1103 = vmul.f32 %v1081, 0.01
      %v1104 = vmul.f32 %v1086, 0.01
      %v1105 = vmul.f32 %v1091, 0.01
      %v1106 = vmul.f32 %v1096, 0.01
      %v1107 = vsel %vm1099, %v1081, %v1103
      %v1108 = vsel %vm1100, %v1086, %v1104
      %v1109 = vsel %vm1101, %v1091, %v1105
      %v1110 = vsel %vm1102, %v1096, %v1106
      %v1111 = vld [vmem:[%s5] sm:$0xff]
      %vm1112 = vcmask 64512
      %v1114 = vsel %vm1112, %v1111, 0
      %1116 = vmatprep.subr.mxu0 0.0
      %1117 = vmatpush1.msra.mxu0 0.0
      %1118 = vmatprep.subr.mxu0 0.0
      %1119 = vmatpush1.msra.mxu0 0.0
      %1120 = vmatprep.subr.mxu0 0.0
      %1121 = vmatpush1.msra.mxu0 0.0
      %1122 = vmatprep.subr.mxu0 0.0
      %1123 = vmatpush1.msra.mxu0 0.0
      %1124 = vmatprep.subr.mxu0 0.0
      %1125 = vmatpush1.msra.mxu0 0.0
      %1126 = vmatprep.subr.mxu0 0.0
      %1127 = vmatpush1.msra.mxu0 0.0
      %1128 = vmatprep.subr.mxu0 0.0
      %1129 = vmatpush1.msra.mxu0 0.0
      %1130 = vmatprep.subr.mxu0 0.0
      %1131 = vmatpush1.msra.mxu0 0.0
      %1132 = vmatprep.subr.mxu0 0.0
      %1133 = vmatpush1.msra.mxu0 0.0
      %1134 = vmatprep.subr.mxu0 0.0
      %1135 = vmatpush1.msra.mxu0 0.0
      %1136 = vmatprep.subr.mxu0 0.0
      %1137 = vmatpush1.msra.mxu0 0.0
      %1138 = vmatprep.subr.mxu0 0.0
      %1139 = vmatpush1.msra.mxu0 0.0
      %1140 = vmatprep.subr.mxu0 0.0
      %1141 = vmatpush1.msra.mxu0 0.0
      %1142 = vmatprep.subr.mxu0 0.0
      %1143 = vmatpush1.msra.mxu0 0.0
      %1144 = vmatprep.subr.mxu0 0.0
      %1145 = vmatpush1.msra.mxu0 0.0
      %1146 = vmatprep.subr.mxu0 0.0
      %1147 = vmatpush1.msra.mxu0 %v656
      %1148 = vmatprep.subr.mxu0 0.0
      %1149 = vmatpush2.msra.mxu0 0.0
      %1150 = vmatprep.subr.mxu0 0.0
      %1151 = vmatpush2.msra.mxu0 0.0
      %1152 = vmatprep.subr.mxu0 0.0
      %1153 = vmatpush2.msra.mxu0 0.0
      %1154 = vmatprep.subr.mxu0 0.0
      %1155 = vmatpush2.msra.mxu0 0.0
      %1156 = vmatprep.subr.mxu0 0.0
      %1157 = vmatpush2.msra.mxu0 0.0
      %1158 = vmatprep.subr.mxu0 0.0
      %1159 = vmatpush2.msra.mxu0 0.0
      %1160 = vmatprep.subr.mxu0 0.0
      %1161 = vmatpush2.msra.mxu0 0.0
      %1162 = vmatprep.subr.mxu0 0.0
      %1163 = vmatpush2.msra.mxu0 0.0
      %1164 = vmatprep.subr.mxu0 0.0
      %1165 = vmatpush2.msra.mxu0 0.0
      %1166 = vmatprep.subr.mxu0 0.0
      %1167 = vmatpush2.msra.mxu0 0.0
      %1168 = vmatprep.subr.mxu0 0.0
      %1169 = vmatpush2.msra.mxu0 0.0
      %1170 = vmatprep.subr.mxu0 0.0
      %1171 = vmatpush2.msra.mxu0 0.0
      %1172 = vmatprep.subr.mxu0 0.0
      %1173 = vmatpush2.msra.mxu0 0.0
      %1174 = vmatprep.subr.mxu0 0.0
      %1175 = vmatpush2.msra.mxu0 0.0
      %1176 = vmatprep.subr.mxu0 0.0
      %1177 = vmatpush2.msra.mxu0 0.0
      %1178 = vmatprep.subr.mxu0 0.0
      %1179 = vmatpush2.msra.mxu0 0.0
      %1180 = vmatprep.mubr.f32.mxu0 0.0
      %1181 = vmatmul.mubr.f32.gmra.mxu0 %v1114
      %v1182 = vpop.f32.mrf.mxu0
      %v1183 = vadd.f32 0.0, %v1182
      %v1184 = vpop.f32.mrf.mxu0
      %1185 = vdwg.mxu0
      %vm1186 = vcmp.gt.f32.partialorder %v1183, 0.0
      %v1187 = vmul.f32 %v1183, 0.01
      %v1188 = vsel %vm1186, %v1183, %v1187
      %v1189 = vld [vmem:[%s6] sm:$0xff]
      %v1191 = vsel %vm1112, %v1189, 0
      %1193 = vmatprep.subr.mxu0 0.0
      %1194 = vmatpush1.msra.mxu0 0.0
      %1195 = vmatprep.subr.mxu0 0.0
      %1196 = vmatpush1.msra.mxu0 0.0
      %1197 = vmatprep.subr.mxu0 0.0
      %1198 = vmatpush1.msra.mxu0 0.0
      %1199 = vmatprep.subr.mxu0 0.0
      %1200 = vmatpush1.msra.mxu0 0.0
      %1201 = vmatprep.subr.mxu0 0.0
      %1202 = vmatpush1.msra.mxu0 0.0
      %1203 = vmatprep.subr.mxu0 0.0
      %1204 = vmatpush1.msra.mxu0 0.0
      %1205 = vmatprep.subr.mxu0 0.0
      %1206 = vmatpush1.msra.mxu0 0.0
      %1207 = vmatprep.subr.mxu0 0.0
      %1208 = vmatpush1.msra.mxu0 0.0
      %1209 = vmatprep.subr.mxu0 0.0
      %1210 = vmatpush1.msra.mxu0 0.0
      %1211 = vmatprep.subr.mxu0 0.0
      %1212 = vmatpush1.msra.mxu0 0.0
      %1213 = vmatprep.subr.mxu0 0.0
      %1214 = vmatpush1.msra.mxu0 0.0
      %1215 = vmatprep.subr.mxu0 0.0
      %1216 = vmatpush1.msra.mxu0 0.0
      %1217 = vmatprep.subr.mxu0 0.0
      %1218 = vmatpush1.msra.mxu0 0.0
      %1219 = vmatprep.subr.mxu0 0.0
      %1220 = vmatpush1.msra.mxu0 0.0
      %1221 = vmatprep.subr.mxu0 0.0
      %1222 = vmatpush1.msra.mxu0 0.0
      %1223 = vmatprep.subr.mxu0 0.0
      %1224 = vmatpush1.msra.mxu0 %v1188
      %1225 = vmatprep.subr.mxu0 0.0
      %1226 = vmatpush2.msra.mxu0 0.0
      %1227 = vmatprep.subr.mxu0 0.0
      %1228 = vmatpush2.msra.mxu0 0.0
      %1229 = vmatprep.subr.mxu0 0.0
      %1230 = vmatpush2.msra.mxu0 0.0
      %1231 = vmatprep.subr.mxu0 0.0
      %1232 = vmatpush2.msra.mxu0 0.0
      %1233 = vmatprep.subr.mxu0 0.0
      %1234 = vmatpush2.msra.mxu0 0.0
      %1235 = vmatprep.subr.mxu0 0.0
      %1236 = vmatpush2.msra.mxu0 0.0
      %1237 = vmatprep.subr.mxu0 0.0
      %1238 = vmatpush2.msra.mxu0 0.0
      %1239 = vmatprep.subr.mxu0 0.0
      %1240 = vmatpush2.msra.mxu0 0.0
      %1241 = vmatprep.subr.mxu0 0.0
      %1242 = vmatpush2.msra.mxu0 0.0
      %1243 = vmatprep.subr.mxu0 0.0
      %1244 = vmatpush2.msra.mxu0 0.0
      %1245 = vmatprep.subr.mxu0 0.0
      %1246 = vmatpush2.msra.mxu0 0.0
      %1247 = vmatprep.subr.mxu0 0.0
      %1248 = vmatpush2.msra.mxu0 0.0
      %1249 = vmatprep.subr.mxu0 0.0
      %1250 = vmatpush2.msra.mxu0 0.0
      %1251 = vmatprep.subr.mxu0 0.0
      %1252 = vmatpush2.msra.mxu0 0.0
      %1253 = vmatprep.subr.mxu0 0.0
      %1254 = vmatpush2.msra.mxu0 0.0
      %1255 = vmatprep.subr.mxu0 0.0
      %1256 = vmatpush2.msra.mxu0 0.0
      %1257 = vmatprep.mubr.f32.mxu0 0.0
      %1258 = vmatmul.mubr.f32.gmra.mxu0 %v1191
      %v1259 = vpop.f32.mrf.mxu0
      %v1260 = vadd.f32 0.0, %v1259
      %v1261 = vpop.f32.mrf.mxu0
      %1262 = vdwg.mxu0
      %vm1263 = vcmp.gt.f32.partialorder %v1260, 0.0
      %v1264 = vmul.f32 %v1260, 0.01
      %v1265 = vsel %vm1263, %v1260, %v1264
      %1267 = vset.pattern.permute.xlu0 0
      %1268 = vperm.xlu0 %1267, %v1107
      %v1269 = vpop.permute.xlu0 %1268
      %1272 = vset.pattern.permute.xlu0 0
      %1273 = vperm.xlu0 %1272, %v1108
      %v1274 = vpop.permute.xlu0 %1273
      %1277 = vset.pattern.permute.xlu0 0
      %1278 = vperm.xlu0 %1277, %v1109
      %v1279 = vpop.permute.xlu0 %1278
      %1282 = vset.pattern.permute.xlu0 0
      %1283 = vperm.xlu0 %1282, %v1110
      %v1284 = vpop.permute.xlu0 %1283
      %v1286 = vlaneseq
      %v1287 = vshrl.u32 %v1286, 7
      %v1288 = vsub.s32 0, %v1287
      %v1289 = vrot.slane %v914, %v1288
      %v1290 = vlaneseq
      %v1291 = vshrl.u32 %v1290, 7
      %v1292 = vsub.s32 0, %v1291
      %v1293 = vrot.slane %v915, %v1292
      %v1294 = vmul.f32 %v1269, %v1289
      %v1295 = vmul.f32 %v1269, %v1293
      %v1296 = vmul.f32 %v1274, %v1289
      %v1297 = vmul.f32 %v1274, %v1293
      %v1298 = vmul.f32 %v1279, %v1289
      %v1299 = vmul.f32 %v1279, %v1293
      %v1300 = vmul.f32 %v1284, %v1289
      %v1301 = vmul.f32 %v1284, %v1293
      %s1303 = vtos %v1265
      %v1304 = vstv %s1303
      %v1306 = vmul.f32 %v1304, %v1294
      %v1307 = vmul.f32 %v1304, %v1295
      %v1308 = vmul.f32 %v1304, %v1296
      %v1309 = vmul.f32 %v1304, %v1297
      %v1310 = vmul.f32 %v1304, %v1298
      %v1311 = vmul.f32 %v1304, %v1299
      %v1312 = vmul.f32 %v1304, %v1300
      %v1313 = vmul.f32 %v1304, %v1301
      %v1314 = vld [vmem:[%s301] sm:$0xff]
      %v1315 = vld [vmem:[%s301 + $0x8] sm:$0xff]
      %v1316 = vld [vmem:[%s301 + $0x10] sm:$0xff]
      %v1317 = vld [vmem:[%s301 + $0x18] sm:$0xff]
      %v1318 = vld [vmem:[%s301 + $0x20] sm:$0xff]
      %v1319 = vld [vmem:[%s301 + $0x28] sm:$0xff]
      %v1320 = vld [vmem:[%s301 + $0x30] sm:$0xff]
      %v1321 = vld [vmem:[%s301 + $0x38] sm:$0xff]
      %v1322 = vxor.u32 %v1306, 2147483648
      %v1323 = vxor.u32 %v1307, 2147483648
      %v1324 = vxor.u32 %v1308, 2147483648
      %v1325 = vxor.u32 %v1309, 2147483648
      %v1326 = vxor.u32 %v1310, 2147483648
      %v1327 = vxor.u32 %v1311, 2147483648
      %v1328 = vxor.u32 %v1312, 2147483648
      %v1329 = vxor.u32 %v1313, 2147483648
      %v1330 = vmul.f32 %v1322, 1.442695
      %v1331 = vpow.pop %v1330
      %v1332 = vmul.f32 %v1323, 1.442695
      %v1333 = vpow.pop %v1332
      %v1334 = vmul.f32 %v1324, 1.442695
      %v1335 = vpow.pop %v1334
      %v1336 = vmul.f32 %v1325, 1.442695
      %v1337 = vpow.pop %v1336
      %v1338 = vmul.f32 %v1326, 1.442695
      %v1339 = vpow.pop %v1338
      %v1340 = vmul.f32 %v1327, 1.442695
      %v1341 = vpow.pop %v1340
      %v1342 = vmul.f32 %v1328, 1.442695
      %v1343 = vpow.pop %v1342
      %v1344 = vmul.f32 %v1329, 1.442695
      %v1345 = vpow.pop %v1344
      %v1346 = vadd.f32 %v1331, 1.0
      %v1347 = vadd.f32 %v1333, 1.0
      %v1348 = vadd.f32 %v1335, 1.0
      %v1349 = vadd.f32 %v1337, 1.0
      %v1350 = vadd.f32 %v1339, 1.0
      %v1351 = vadd.f32 %v1341, 1.0
      %v1352 = vadd.f32 %v1343, 1.0
      %v1353 = vadd.f32 %v1345, 1.0
      %v1354 = vrcp.pop %v1346
      %v1355 = vmul.f32 1.0, %v1354
      %v1356 = vrcp.pop %v1347
      %v1357 = vmul.f32 1.0, %v1356
      %v1358 = vrcp.pop %v1348
      %v1359 = vmul.f32 1.0, %v1358
      %v1360 = vrcp.pop %v1349
      %v1361 = vmul.f32 1.0, %v1360
      %v1362 = vrcp.pop %v1350
      %v1363 = vmul.f32 1.0, %v1362
      %v1364 = vrcp.pop %v1351
      %v1365 = vmul.f32 1.0, %v1364
      %v1366 = vrcp.pop %v1352
      %v1367 = vmul.f32 1.0, %v1366
      %v1368 = vrcp.pop %v1353
      %v1369 = vmul.f32 1.0, %v1368
      %v1370 = vadd.f32 %v1355, 0.5
      %v1371 = vadd.f32 %v1357, 0.5
      %v1372 = vadd.f32 %v1359, 0.5
      %v1373 = vadd.f32 %v1361, 0.5
      %v1374 = vadd.f32 %v1363, 0.5
      %v1375 = vadd.f32 %v1365, 0.5
      %v1376 = vadd.f32 %v1367, 0.5
      %v1377 = vadd.f32 %v1369, 0.5
      %v1378 = vmul.f32 %v1314, %v1370
      %v1379 = vmul.f32 %v1315, %v1371
      %v1380 = vmul.f32 %v1316, %v1372
      %v1381 = vmul.f32 %v1317, %v1373
      %v1382 = vmul.f32 %v1318, %v1374
      %v1383 = vmul.f32 %v1319, %v1375
      %v1384 = vmul.f32 %v1320, %v1376
      %v1385 = vmul.f32 %v1321, %v1377
      %1386 = vst [vmem:[%s306] sm:$0xff] %v1378
      %1387 = vst [vmem:[%s306 + $0x8] sm:$0xff] %v1379
      %1388 = vst [vmem:[%s306 + $0x10] sm:$0xff] %v1380
      %1389 = vst [vmem:[%s306 + $0x18] sm:$0xff] %v1381
      %1390 = vst [vmem:[%s306 + $0x20] sm:$0xff] %v1382
      %1391 = vst [vmem:[%s306 + $0x28] sm:$0xff] %v1383
      %1392 = vst [vmem:[%s306 + $0x30] sm:$0xff] %v1384
      %1393 = vst [vmem:[%s306 + $0x38] sm:$0xff] %v1385
      %v1394 = vrot.slane %v1265, 1
      %s1395 = vtos %v1394
      %v1396 = vstv %s1395
      %v1398 = vmul.f32 %v1396, %v1294
      %v1399 = vmul.f32 %v1396, %v1295
      %v1400 = vmul.f32 %v1396, %v1296
      %v1401 = vmul.f32 %v1396, %v1297
      %v1402 = vmul.f32 %v1396, %v1298
      %v1403 = vmul.f32 %v1396, %v1299
      %v1404 = vmul.f32 %v1396, %v1300
      %v1405 = vmul.f32 %v1396, %v1301
      %s1406 = scalar_lea.vmem %s301, 64
      %v1407 = vld [vmem:[%s1406] sm:$0xff]
      %v1408 = vld [vmem:[%s1406 + $0x8] sm:$0xff]
      %v1409 = vld [vmem:[%s1406 + $0x10] sm:$0xff]
      %v1410 = vld [vmem:[%s1406 + $0x18] sm:$0xff]
      %v1411 = vld [vmem:[%s1406 + $0x20] sm:$0xff]
      %v1412 = vld [vmem:[%s1406 + $0x28] sm:$0xff]
      %v1413 = vld [vmem:[%s1406 + $0x30] sm:$0xff]
      %v1414 = vld [vmem:[%s1406 + $0x38] sm:$0xff]
      %v1415 = vxor.u32 %v1398, 2147483648
      %v1416 = vxor.u32 %v1399, 2147483648
      %v1417 = vxor.u32 %v1400, 2147483648
      %v1418 = vxor.u32 %v1401, 2147483648
      %v1419 = vxor.u32 %v1402, 2147483648
      %v1420 = vxor.u32 %v1403, 2147483648
      %v1421 = vxor.u32 %v1404, 2147483648
      %v1422 = vxor.u32 %v1405, 2147483648
      %v1423 = vmul.f32 %v1415, 1.442695
      %v1424 = vpow.pop %v1423
      %v1425 = vmul.f32 %v1416, 1.442695
      %v1426 = vpow.pop %v1425
      %v1427 = vmul.f32 %v1417, 1.442695
      %v1428 = vpow.pop %v1427
      %v1429 = vmul.f32 %v1418, 1.442695
      %v1430 = vpow.pop %v1429
      %v1431 = vmul.f32 %v1419, 1.442695
      %v1432 = vpow.pop %v1431
      %v1433 = vmul.f32 %v1420, 1.442695
      %v1434 = vpow.pop %v1433
      %v1435 = vmul.f32 %v1421, 1.442695
      %v1436 = vpow.pop %v1435
      %v1437 = vmul.f32 %v1422, 1.442695
      %v1438 = vpow.pop %v1437
      %v1439 = vadd.f32 %v1424, 1.0
      %v1440 = vadd.f32 %v1426, 1.0
      %v1441 = vadd.f32 %v1428, 1.0
      %v1442 = vadd.f32 %v1430, 1.0
      %v1443 = vadd.f32 %v1432, 1.0
      %v1444 = vadd.f32 %v1434, 1.0
      %v1445 = vadd.f32 %v1436, 1.0
      %v1446 = vadd.f32 %v1438, 1.0
      %v1447 = vrcp.pop %v1439
      %v1448 = vmul.f32 1.0, %v1447
      %v1449 = vrcp.pop %v1440
      %v1450 = vmul.f32 1.0, %v1449
      %v1451 = vrcp.pop %v1441
      %v1452 = vmul.f32 1.0, %v1451
      %v1453 = vrcp.pop %v1442
      %v1454 = vmul.f32 1.0, %v1453
      %v1455 = vrcp.pop %v1443
      %v1456 = vmul.f32 1.0, %v1455
      %v1457 = vrcp.pop %v1444
      %v1458 = vmul.f32 1.0, %v1457
      %v1459 = vrcp.pop %v1445
      %v1460 = vmul.f32 1.0, %v1459
      %v1461 = vrcp.pop %v1446
      %v1462 = vmul.f32 1.0, %v1461
      %v1463 = vadd.f32 %v1448, 0.5
      %v1464 = vadd.f32 %v1450, 0.5
      %v1465 = vadd.f32 %v1452, 0.5
      %v1466 = vadd.f32 %v1454, 0.5
      %v1467 = vadd.f32 %v1456, 0.5
      %v1468 = vadd.f32 %v1458, 0.5
      %v1469 = vadd.f32 %v1460, 0.5
      %v1470 = vadd.f32 %v1462, 0.5
      %v1471 = vmul.f32 %v1407, %v1463
      %v1472 = vmul.f32 %v1408, %v1464
      %v1473 = vmul.f32 %v1409, %v1465
      %v1474 = vmul.f32 %v1410, %v1466
      %v1475 = vmul.f32 %v1411, %v1467
      %v1476 = vmul.f32 %v1412, %v1468
      %v1477 = vmul.f32 %v1413, %v1469
      %v1478 = vmul.f32 %v1414, %v1470
      %s1479 = scalar_lea.vmem %s306, 64
      %1480 = vst [vmem:[%s1479] sm:$0xff] %v1471
      %1481 = vst [vmem:[%s1479 + $0x8] sm:$0xff] %v1472
      %1482 = vst [vmem:[%s1479 + $0x10] sm:$0xff] %v1473
      %1483 = vst [vmem:[%s1479 + $0x18] sm:$0xff] %v1474
      %1484 = vst [vmem:[%s1479 + $0x20] sm:$0xff] %v1475
      %1485 = vst [vmem:[%s1479 + $0x28] sm:$0xff] %v1476
      %1486 = vst [vmem:[%s1479 + $0x30] sm:$0xff] %v1477
      %1487 = vst [vmem:[%s1479 + $0x38] sm:$0xff] %v1478
      %v1488 = vrot.slane %v1265, 2
      %s1489 = vtos %v1488
      %v1490 = vstv %s1489
      %v1492 = vmul.f32 %v1490, %v1294
      %v1493 = vmul.f32 %v1490, %v1295
      %v1494 = vmul.f32 %v1490, %v1296
      %v1495 = vmul.f32 %v1490, %v1297
      %v1496 = vmul.f32 %v1490, %v1298
      %v1497 = vmul.f32 %v1490, %v1299
      %v1498 = vmul.f32 %v1490, %v1300
      %v1499 = vmul.f32 %v1490, %v1301
      %s1500 = scalar_lea.vmem %s301, 128
      %v1501 = vld [vmem:[%s1500] sm:$0xff]
      %v1502 = vld [vmem:[%s1500 + $0x8] sm:$0xff]
      %v1503 = vld [vmem:[%s1500 + $0x10] sm:$0xff]
      %v1504 = vld [vmem:[%s1500 + $0x18] sm:$0xff]
      %v1505 = vld [vmem:[%s1500 + $0x20] sm:$0xff]
      %v1506 = vld [vmem:[%s1500 + $0x28] sm:$0xff]
      %v1507 = vld [vmem:[%s1500 + $0x30] sm:$0xff]
      %v1508 = vld [vmem:[%s1500 + $0x38] sm:$0xff]
      %v1509 = vxor.u32 %v1492, 2147483648
      %v1510 = vxor.u32 %v1493, 2147483648
      %v1511 = vxor.u32 %v1494, 2147483648
      %v1512 = vxor.u32 %v1495, 2147483648
      %v1513 = vxor.u32 %v1496, 2147483648
      %v1514 = vxor.u32 %v1497, 2147483648
      %v1515 = vxor.u32 %v1498, 2147483648
      %v1516 = vxor.u32 %v1499, 2147483648
      %v1517 = vmul.f32 %v1509, 1.442695
      %v1518 = vpow.pop %v1517
      %v1519 = vmul.f32 %v1510, 1.442695
      %v1520 = vpow.pop %v1519
      %v1521 = vmul.f32 %v1511, 1.442695
      %v1522 = vpow.pop %v1521
      %v1523 = vmul.f32 %v1512, 1.442695
      %v1524 = vpow.pop %v1523
      %v1525 = vmul.f32 %v1513, 1.442695
      %v1526 = vpow.pop %v1525
      %v1527 = vmul.f32 %v1514, 1.442695
      %v1528 = vpow.pop %v1527
      %v1529 = vmul.f32 %v1515, 1.442695
      %v1530 = vpow.pop %v1529
      %v1531 = vmul.f32 %v1516, 1.442695
      %v1532 = vpow.pop %v1531
      %v1533 = vadd.f32 %v1518, 1.0
      %v1534 = vadd.f32 %v1520, 1.0
      %v1535 = vadd.f32 %v1522, 1.0
      %v1536 = vadd.f32 %v1524, 1.0
      %v1537 = vadd.f32 %v1526, 1.0
      %v1538 = vadd.f32 %v1528, 1.0
      %v1539 = vadd.f32 %v1530, 1.0
      %v1540 = vadd.f32 %v1532, 1.0
      %v1541 = vrcp.pop %v1533
      %v1542 = vmul.f32 1.0, %v1541
      %v1543 = vrcp.pop %v1534
      %v1544 = vmul.f32 1.0, %v1543
      %v1545 = vrcp.pop %v1535
      %v1546 = vmul.f32 1.0, %v1545
      %v1547 = vrcp.pop %v1536
      %v1548 = vmul.f32 1.0, %v1547
      %v1549 = vrcp.pop %v1537
      %v1550 = vmul.f32 1.0, %v1549
      %v1551 = vrcp.pop %v1538
      %v1552 = vmul.f32 1.0, %v1551
      %v1553 = vrcp.pop %v1539
      %v1554 = vmul.f32 1.0, %v1553
      %v1555 = vrcp.pop %v1540
      %v1556 = vmul.f32 1.0, %v1555
      %v1557 = vadd.f32 %v1542, 0.5
      %v1558 = vadd.f32 %v1544, 0.5
      %v1559 = vadd.f32 %v1546, 0.5
      %v1560 = vadd.f32 %v1548, 0.5
      %v1561 = vadd.f32 %v1550, 0.5
      %v1562 = vadd.f32 %v1552, 0.5
      %v1563 = vadd.f32 %v1554, 0.5
      %v1564 = vadd.f32 %v1556, 0.5
      %v1565 = vmul.f32 %v1501, %v1557
      %v1566 = vmul.f32 %v1502, %v1558
      %v1567 = vmul.f32 %v1503, %v1559
      %v1568 = vmul.f32 %v1504, %v1560
      %v1569 = vmul.f32 %v1505, %v1561
      %v1570 = vmul.f32 %v1506, %v1562
      %v1571 = vmul.f32 %v1507, %v1563
      %v1572 = vmul.f32 %v1508, %v1564
      %s1573 = scalar_lea.vmem %s306, 128
      %1574 = vst [vmem:[%s1573] sm:$0xff] %v1565
      %1575 = vst [vmem:[%s1573 + $0x8] sm:$0xff] %v1566
      %1576 = vst [vmem:[%s1573 + $0x10] sm:$0xff] %v1567
      %1577 = vst [vmem:[%s1573 + $0x18] sm:$0xff] %v1568
      %1578 = vst [vmem:[%s1573 + $0x20] sm:$0xff] %v1569
      %1579 = vst [vmem:[%s1573 + $0x28] sm:$0xff] %v1570
      %1580 = vst [vmem:[%s1573 + $0x30] sm:$0xff] %v1571
      %1581 = vst [vmem:[%s1573 + $0x38] sm:$0xff] %v1572
      %v1582 = vrot.slane %v1265, 3
      %s1583 = vtos %v1582
      %v1584 = vstv %s1583
      %v1586 = vmul.f32 %v1584, %v1294
      %v1587 = vmul.f32 %v1584, %v1295
      %v1588 = vmul.f32 %v1584, %v1296
      %v1589 = vmul.f32 %v1584, %v1297
      %v1590 = vmul.f32 %v1584, %v1298
      %v1591 = vmul.f32 %v1584, %v1299
      %v1592 = vmul.f32 %v1584, %v1300
      %v1593 = vmul.f32 %v1584, %v1301
      %s1594 = scalar_lea.vmem %s301, 192
      %v1595 = vld [vmem:[%s1594] sm:$0xff]
      %v1596 = vld [vmem:[%s1594 + $0x8] sm:$0xff]
      %v1597 = vld [vmem:[%s1594 + $0x10] sm:$0xff]
      %v1598 = vld [vmem:[%s1594 + $0x18] sm:$0xff]
      %v1599 = vld [vmem:[%s1594 + $0x20] sm:$0xff]
      %v1600 = vld [vmem:[%s1594 + $0x28] sm:$0xff]
      %v1601 = vld [vmem:[%s1594 + $0x30] sm:$0xff]
      %v1602 = vld [vmem:[%s1594 + $0x38] sm:$0xff]
      %v1603 = vxor.u32 %v1586, 2147483648
      %v1604 = vxor.u32 %v1587, 2147483648
      %v1605 = vxor.u32 %v1588, 2147483648
      %v1606 = vxor.u32 %v1589, 2147483648
      %v1607 = vxor.u32 %v1590, 2147483648
      %v1608 = vxor.u32 %v1591, 2147483648
      %v1609 = vxor.u32 %v1592, 2147483648
      %v1610 = vxor.u32 %v1593, 2147483648
      %v1611 = vmul.f32 %v1603, 1.442695
      %v1612 = vpow.pop %v1611
      %v1613 = vmul.f32 %v1604, 1.442695
      %v1614 = vpow.pop %v1613
      %v1615 = vmul.f32 %v1605, 1.442695
      %v1616 = vpow.pop %v1615
      %v1617 = vmul.f32 %v1606, 1.442695
      %v1618 = vpow.pop %v1617
      %v1619 = vmul.f32 %v1607, 1.442695
      %v1620 = vpow.pop %v1619
      %v1621 = vmul.f32 %v1608, 1.442695
      %v1622 = vpow.pop %v1621
      %v1623 = vmul.f32 %v1609, 1.442695
      %v1624 = vpow.pop %v1623
      %v1625 = vmul.f32 %v1610, 1.442695
      %v1626 = vpow.pop %v1625
      %v1627 = vadd.f32 %v1612, 1.0
      %v1628 = vadd.f32 %v1614, 1.0
      %v1629 = vadd.f32 %v1616, 1.0
      %v1630 = vadd.f32 %v1618, 1.0
      %v1631 = vadd.f32 %v1620, 1.0
      %v1632 = vadd.f32 %v1622, 1.0
      %v1633 = vadd.f32 %v1624, 1.0
      %v1634 = vadd.f32 %v1626, 1.0
      %v1635 = vrcp.pop %v1627
      %v1636 = vmul.f32 1.0, %v1635
      %v1637 = vrcp.pop %v1628
      %v1638 = vmul.f32 1.0, %v1637
      %v1639 = vrcp.pop %v1629
      %v1640 = vmul.f32 1.0, %v1639
      %v1641 = vrcp.pop %v1630
      %v1642 = vmul.f32 1.0, %v1641
      %v1643 = vrcp.pop %v1631
      %v1644 = vmul.f32 1.0, %v1643
      %v1645 = vrcp.pop %v1632
      %v1646 = vmul.f32 1.0, %v1645
      %v1647 = vrcp.pop %v1633
      %v1648 = vmul.f32 1.0, %v1647
      %v1649 = vrcp.pop %v1634
      %v1650 = vmul.f32 1.0, %v1649
      %v1651 = vadd.f32 %v1636, 0.5
      %v1652 = vadd.f32 %v1638, 0.5
      %v1653 = vadd.f32 %v1640, 0.5
      %v1654 = vadd.f32 %v1642, 0.5
      %v1655 = vadd.f32 %v1644, 0.5
      %v1656 = vadd.f32 %v1646, 0.5
      %v1657 = vadd.f32 %v1648, 0.5
      %v1658 = vadd.f32 %v1650, 0.5
      %v1659 = vmul.f32 %v1595, %v1651
      %v1660 = vmul.f32 %v1596, %v1652
      %v1661 = vmul.f32 %v1597, %v1653
      %v1662 = vmul.f32 %v1598, %v1654
      %v1663 = vmul.f32 %v1599, %v1655
      %v1664 = vmul.f32 %v1600, %v1656
      %v1665 = vmul.f32 %v1601, %v1657
      %v1666 = vmul.f32 %v1602, %v1658
      %s1667 = scalar_lea.vmem %s306, 192
      %1668 = vst [vmem:[%s1667] sm:$0xff] %v1659
      %1669 = vst [vmem:[%s1667 + $0x8] sm:$0xff] %v1660
      %1670 = vst [vmem:[%s1667 + $0x10] sm:$0xff] %v1661
      %1671 = vst [vmem:[%s1667 + $0x18] sm:$0xff] %v1662
      %1672 = vst [vmem:[%s1667 + $0x20] sm:$0xff] %v1663
      %1673 = vst [vmem:[%s1667 + $0x28] sm:$0xff] %v1664
      %1674 = vst [vmem:[%s1667 + $0x30] sm:$0xff] %v1665
      %1675 = vst [vmem:[%s1667 + $0x38] sm:$0xff] %v1666
      %v1676 = vrot.slane %v1265, 4
      %s1677 = vtos %v1676
      %v1678 = vstv %s1677
      %v1680 = vmul.f32 %v1678, %v1294
      %v1681 = vmul.f32 %v1678, %v1295
      %v1682 = vmul.f32 %v1678, %v1296
      %v1683 = vmul.f32 %v1678, %v1297
      %v1684 = vmul.f32 %v1678, %v1298
      %v1685 = vmul.f32 %v1678, %v1299
      %v1686 = vmul.f32 %v1678, %v1300
      %v1687 = vmul.f32 %v1678, %v1301
      %s1688 = scalar_lea.vmem %s301, 256
      %v1689 = vld [vmem:[%s1688] sm:$0xff]
      %v1690 = vld [vmem:[%s1688 + $0x8] sm:$0xff]
      %v1691 = vld [vmem:[%s1688 + $0x10] sm:$0xff]
      %v1692 = vld [vmem:[%s1688 + $0x18] sm:$0xff]
      %v1693 = vld [vmem:[%s1688 + $0x20] sm:$0xff]
      %v1694 = vld [vmem:[%s1688 + $0x28] sm:$0xff]
      %v1695 = vld [vmem:[%s1688 + $0x30] sm:$0xff]
      %v1696 = vld [vmem:[%s1688 + $0x38] sm:$0xff]
      %v1697 = vxor.u32 %v1680, 2147483648
      %v1698 = vxor.u32 %v1681, 2147483648
      %v1699 = vxor.u32 %v1682, 2147483648
      %v1700 = vxor.u32 %v1683, 2147483648
      %v1701 = vxor.u32 %v1684, 2147483648
      %v1702 = vxor.u32 %v1685, 2147483648
      %v1703 = vxor.u32 %v1686, 2147483648
      %v1704 = vxor.u32 %v1687, 2147483648
      %v1705 = vmul.f32 %v1697, 1.442695
      %v1706 = vpow.pop %v1705
      %v1707 = vmul.f32 %v1698, 1.442695
      %v1708 = vpow.pop %v1707
      %v1709 = vmul.f32 %v1699, 1.442695
      %v1710 = vpow.pop %v1709
      %v1711 = vmul.f32 %v1700, 1.442695
      %v1712 = vpow.pop %v1711
      %v1713 = vmul.f32 %v1701, 1.442695
      %v1714 = vpow.pop %v1713
      %v1715 = vmul.f32 %v1702, 1.442695
      %v1716 = vpow.pop %v1715
      %v1717 = vmul.f32 %v1703, 1.442695
      %v1718 = vpow.pop %v1717
      %v1719 = vmul.f32 %v1704, 1.442695
      %v1720 = vpow.pop %v1719
      %v1721 = vadd.f32 %v1706, 1.0
      %v1722 = vadd.f32 %v1708, 1.0
      %v1723 = vadd.f32 %v1710, 1.0
      %v1724 = vadd.f32 %v1712, 1.0
      %v1725 = vadd.f32 %v1714, 1.0
      %v1726 = vadd.f32 %v1716, 1.0
      %v1727 = vadd.f32 %v1718, 1.0
      %v1728 = vadd.f32 %v1720, 1.0
      %v1729 = vrcp.pop %v1721
      %v1730 = vmul.f32 1.0, %v1729
      %v1731 = vrcp.pop %v1722
      %v1732 = vmul.f32 1.0, %v1731
      %v1733 = vrcp.pop %v1723
      %v1734 = vmul.f32 1.0, %v1733
      %v1735 = vrcp.pop %v1724
      %v1736 = vmul.f32 1.0, %v1735
      %v1737 = vrcp.pop %v1725
      %v1738 = vmul.f32 1.0, %v1737
      %v1739 = vrcp.pop %v1726
      %v1740 = vmul.f32 1.0, %v1739
      %v1741 = vrcp.pop %v1727
      %v1742 = vmul.f32 1.0, %v1741
      %v1743 = vrcp.pop %v1728
      %v1744 = vmul.f32 1.0, %v1743
      %v1745 = vadd.f32 %v1730, 0.5
      %v1746 = vadd.f32 %v1732, 0.5
      %v1747 = vadd.f32 %v1734, 0.5
      %v1748 = vadd.f32 %v1736, 0.5
      %v1749 = vadd.f32 %v1738, 0.5
      %v1750 = vadd.f32 %v1740, 0.5
      %v1751 = vadd.f32 %v1742, 0.5
      %v1752 = vadd.f32 %v1744, 0.5
      %v1753 = vmul.f32 %v1689, %v1745
      %v1754 = vmul.f32 %v1690, %v1746
      %v1755 = vmul.f32 %v1691, %v1747
      %v1756 = vmul.f32 %v1692, %v1748
      %v1757 = vmul.f32 %v1693, %v1749
      %v1758 = vmul.f32 %v1694, %v1750
      %v1759 = vmul.f32 %v1695, %v1751
      %v1760 = vmul.f32 %v1696, %v1752
      %s1761 = scalar_lea.vmem %s306, 256
      %1762 = vst [vmem:[%s1761] sm:$0xff] %v1753
      %1763 = vst [vmem:[%s1761 + $0x8] sm:$0xff] %v1754
      %1764 = vst [vmem:[%s1761 + $0x10] sm:$0xff] %v1755
      %1765 = vst [vmem:[%s1761 + $0x18] sm:$0xff] %v1756
      %1766 = vst [vmem:[%s1761 + $0x20] sm:$0xff] %v1757
      %1767 = vst [vmem:[%s1761 + $0x28] sm:$0xff] %v1758
      %1768 = vst [vmem:[%s1761 + $0x30] sm:$0xff] %v1759
      %1769 = vst [vmem:[%s1761 + $0x38] sm:$0xff] %v1760
      %v1770 = vrot.slane %v1265, 5
      %s1771 = vtos %v1770
      %v1772 = vstv %s1771
      %v1774 = vmul.f32 %v1772, %v1294
      %v1775 = vmul.f32 %v1772, %v1295
      %v1776 = vmul.f32 %v1772, %v1296
      %v1777 = vmul.f32 %v1772, %v1297
      %v1778 = vmul.f32 %v1772, %v1298
      %v1779 = vmul.f32 %v1772, %v1299
      %v1780 = vmul.f32 %v1772, %v1300
      %v1781 = vmul.f32 %v1772, %v1301
      %s1782 = scalar_lea.vmem %s301, 320
      %v1783 = vld [vmem:[%s1782] sm:$0xff]
      %v1784 = vld [vmem:[%s1782 + $0x8] sm:$0xff]
      %v1785 = vld [vmem:[%s1782 + $0x10] sm:$0xff]
      %v1786 = vld [vmem:[%s1782 + $0x18] sm:$0xff]
      %v1787 = vld [vmem:[%s1782 + $0x20] sm:$0xff]
      %v1788 = vld [vmem:[%s1782 + $0x28] sm:$0xff]
      %v1789 = vld [vmem:[%s1782 + $0x30] sm:$0xff]
      %v1790 = vld [vmem:[%s1782 + $0x38] sm:$0xff]
      %v1791 = vxor.u32 %v1774, 2147483648
      %v1792 = vxor.u32 %v1775, 2147483648
      %v1793 = vxor.u32 %v1776, 2147483648
      %v1794 = vxor.u32 %v1777, 2147483648
      %v1795 = vxor.u32 %v1778, 2147483648
      %v1796 = vxor.u32 %v1779, 2147483648
      %v1797 = vxor.u32 %v1780, 2147483648
      %v1798 = vxor.u32 %v1781, 2147483648
      %v1799 = vmul.f32 %v1791, 1.442695
      %v1800 = vpow.pop %v1799
      %v1801 = vmul.f32 %v1792, 1.442695
      %v1802 = vpow.pop %v1801
      %v1803 = vmul.f32 %v1793, 1.442695
      %v1804 = vpow.pop %v1803
      %v1805 = vmul.f32 %v1794, 1.442695
      %v1806 = vpow.pop %v1805
      %v1807 = vmul.f32 %v1795, 1.442695
      %v1808 = vpow.pop %v1807
      %v1809 = vmul.f32 %v1796, 1.442695
      %v1810 = vpow.pop %v1809
      %v1811 = vmul.f32 %v1797, 1.442695
      %v1812 = vpow.pop %v1811
      %v1813 = vmul.f32 %v1798, 1.442695
      %v1814 = vpow.pop %v1813
      %v1815 = vadd.f32 %v1800, 1.0
      %v1816 = vadd.f32 %v1802, 1.0
      %v1817 = vadd.f32 %v1804, 1.0
      %v1818 = vadd.f32 %v1806, 1.0
      %v1819 = vadd.f32 %v1808, 1.0
      %v1820 = vadd.f32 %v1810, 1.0
      %v1821 = vadd.f32 %v1812, 1.0
      %v1822 = vadd.f32 %v1814, 1.0
      %v1823 = vrcp.pop %v1815
      %v1824 = vmul.f32 1.0, %v1823
      %v1825 = vrcp.pop %v1816
      %v1826 = vmul.f32 1.0, %v1825
      %v1827 = vrcp.pop %v1817
      %v1828 = vmul.f32 1.0, %v1827
      %v1829 = vrcp.pop %v1818
      %v1830 = vmul.f32 1.0, %v1829
      %v1831 = vrcp.pop %v1819
      %v1832 = vmul.f32 1.0, %v1831
      %v1833 = vrcp.pop %v1820
      %v1834 = vmul.f32 1.0, %v1833
      %v1835 = vrcp.pop %v1821
      %v1836 = vmul.f32 1.0, %v1835
      %v1837 = vrcp.pop %v1822
      %v1838 = vmul.f32 1.0, %v1837
      %v1839 = vadd.f32 %v1824, 0.5
      %v1840 = vadd.f32 %v1826, 0.5
      %v1841 = vadd.f32 %v1828, 0.5
      %v1842 = vadd.f32 %v1830, 0.5
      %v1843 = vadd.f32 %v1832, 0.5
      %v1844 = vadd.f32 %v1834, 0.5
      %v1845 = vadd.f32 %v1836, 0.5
      %v1846 = vadd.f32 %v1838, 0.5
      %v1847 = vmul.f32 %v1783, %v1839
      %v1848 = vmul.f32 %v1784, %v1840
      %v1849 = vmul.f32 %v1785, %v1841
      %v1850 = vmul.f32 %v1786, %v1842
      %v1851 = vmul.f32 %v1787, %v1843
      %v1852 = vmul.f32 %v1788, %v1844
      %v1853 = vmul.f32 %v1789, %v1845
      %v1854 = vmul.f32 %v1790, %v1846
      %s1855 = scalar_lea.vmem %s306, 320
      %1856 = vst [vmem:[%s1855] sm:$0xff] %v1847
      %1857 = vst [vmem:[%s1855 + $0x8] sm:$0xff] %v1848
      %1858 = vst [vmem:[%s1855 + $0x10] sm:$0xff] %v1849
      %1859 = vst [vmem:[%s1855 + $0x18] sm:$0xff] %v1850
      %1860 = vst [vmem:[%s1855 + $0x20] sm:$0xff] %v1851
      %1861 = vst [vmem:[%s1855 + $0x28] sm:$0xff] %v1852
      %1862 = vst [vmem:[%s1855 + $0x30] sm:$0xff] %v1853
      %1863 = vst [vmem:[%s1855 + $0x38] sm:$0xff] %v1854
      %v1864 = vrot.slane %v1265, 6
      %s1865 = vtos %v1864
      %v1866 = vstv %s1865
      %v1868 = vmul.f32 %v1866, %v1294
      %v1869 = vmul.f32 %v1866, %v1295
      %v1870 = vmul.f32 %v1866, %v1296
      %v1871 = vmul.f32 %v1866, %v1297
      %v1872 = vmul.f32 %v1866, %v1298
      %v1873 = vmul.f32 %v1866, %v1299
      %v1874 = vmul.f32 %v1866, %v1300
      %v1875 = vmul.f32 %v1866, %v1301
      %s1876 = scalar_lea.vmem %s301, 384
      %v1877 = vld [vmem:[%s1876] sm:$0xff]
      %v1878 = vld [vmem:[%s1876 + $0x8] sm:$0xff]
      %v1879 = vld [vmem:[%s1876 + $0x10] sm:$0xff]
      %v1880 = vld [vmem:[%s1876 + $0x18] sm:$0xff]
      %v1881 = vld [vmem:[%s1876 + $0x20] sm:$0xff]
      %v1882 = vld [vmem:[%s1876 + $0x28] sm:$0xff]
      %v1883 = vld [vmem:[%s1876 + $0x30] sm:$0xff]
      %v1884 = vld [vmem:[%s1876 + $0x38] sm:$0xff]
      %v1885 = vxor.u32 %v1868, 2147483648
      %v1886 = vxor.u32 %v1869, 2147483648
      %v1887 = vxor.u32 %v1870, 2147483648
      %v1888 = vxor.u32 %v1871, 2147483648
      %v1889 = vxor.u32 %v1872, 2147483648
      %v1890 = vxor.u32 %v1873, 2147483648
      %v1891 = vxor.u32 %v1874, 2147483648
      %v1892 = vxor.u32 %v1875, 2147483648
      %v1893 = vmul.f32 %v1885, 1.442695
      %v1894 = vpow.pop %v1893
      %v1895 = vmul.f32 %v1886, 1.442695
      %v1896 = vpow.pop %v1895
      %v1897 = vmul.f32 %v1887, 1.442695
      %v1898 = vpow.pop %v1897
      %v1899 = vmul.f32 %v1888, 1.442695
      %v1900 = vpow.pop %v1899
      %v1901 = vmul.f32 %v1889, 1.442695
      %v1902 = vpow.pop %v1901
      %v1903 = vmul.f32 %v1890, 1.442695
      %v1904 = vpow.pop %v1903
      %v1905 = vmul.f32 %v1891, 1.442695
      %v1906 = vpow.pop %v1905
      %v1907 = vmul.f32 %v1892, 1.442695
      %v1908 = vpow.pop %v1907
      %v1909 = vadd.f32 %v1894, 1.0
      %v1910 = vadd.f32 %v1896, 1.0
      %v1911 = vadd.f32 %v1898, 1.0
      %v1912 = vadd.f32 %v1900, 1.0
      %v1913 = vadd.f32 %v1902, 1.0
      %v1914 = vadd.f32 %v1904, 1.0
      %v1915 = vadd.f32 %v1906, 1.0
      %v1916 = vadd.f32 %v1908, 1.0
      %v1917 = vrcp.pop %v1909
      %v1918 = vmul.f32 1.0, %v1917
      %v1919 = vrcp.pop %v1910
      %v1920 = vmul.f32 1.0, %v1919
      %v1921 = vrcp.pop %v1911
      %v1922 = vmul.f32 1.0, %v1921
      %v1923 = vrcp.pop %v1912
      %v1924 = vmul.f32 1.0, %v1923
      %v1925 = vrcp.pop %v1913
      %v1926 = vmul.f32 1.0, %v1925
      %v1927 = vrcp.pop %v1914
      %v1928 = vmul.f32 1.0, %v1927
      %v1929 = vrcp.pop %v1915
      %v1930 = vmul.f32 1.0, %v1929
      %v1931 = vrcp.pop %v1916
      %v1932 = vmul.f32 1.0, %v1931
      %v1933 = vadd.f32 %v1918, 0.5
      %v1934 = vadd.f32 %v1920, 0.5
      %v1935 = vadd.f32 %v1922, 0.5
      %v1936 = vadd.f32 %v1924, 0.5
      %v1937 = vadd.f32 %v1926, 0.5
      %v1938 = vadd.f32 %v1928, 0.5
      %v1939 = vadd.f32 %v1930, 0.5
      %v1940 = vadd.f32 %v1932, 0.5
      %v1941 = vmul.f32 %v1877, %v1933
      %v1942 = vmul.f32 %v1878, %v1934
      %v1943 = vmul.f32 %v1879, %v1935
      %v1944 = vmul.f32 %v1880, %v1936
      %v1945 = vmul.f32 %v1881, %v1937
      %v1946 = vmul.f32 %v1882, %v1938
      %v1947 = vmul.f32 %v1883, %v1939
      %v1948 = vmul.f32 %v1884, %v1940
      %s1949 = scalar_lea.vmem %s306, 384
      %1950 = vst [vmem:[%s1949] sm:$0xff] %v1941
      %1951 = vst [vmem:[%s1949 + $0x8] sm:$0xff] %v1942
      %1952 = vst [vmem:[%s1949 + $0x10] sm:$0xff] %v1943
      %1953 = vst [vmem:[%s1949 + $0x18] sm:$0xff] %v1944
      %1954 = vst [vmem:[%s1949 + $0x20] sm:$0xff] %v1945
      %1955 = vst [vmem:[%s1949 + $0x28] sm:$0xff] %v1946
      %1956 = vst [vmem:[%s1949 + $0x30] sm:$0xff] %v1947
      %1957 = vst [vmem:[%s1949 + $0x38] sm:$0xff] %v1948
      %v1958 = vrot.slane %v1265, 7
      %s1959 = vtos %v1958
      %v1960 = vstv %s1959
      %v1962 = vmul.f32 %v1960, %v1294
      %v1963 = vmul.f32 %v1960, %v1295
      %v1964 = vmul.f32 %v1960, %v1296
      %v1965 = vmul.f32 %v1960, %v1297
      %v1966 = vmul.f32 %v1960, %v1298
      %v1967 = vmul.f32 %v1960, %v1299
      %v1968 = vmul.f32 %v1960, %v1300
      %v1969 = vmul.f32 %v1960, %v1301
      %s1970 = scalar_lea.vmem %s301, 448
      %v1971 = vld [vmem:[%s1970] sm:$0xff]
      %v1972 = vld [vmem:[%s1970 + $0x8] sm:$0xff]
      %v1973 = vld [vmem:[%s1970 + $0x10] sm:$0xff]
      %v1974 = vld [vmem:[%s1970 + $0x18] sm:$0xff]
      %v1975 = vld [vmem:[%s1970 + $0x20] sm:$0xff]
      %v1976 = vld [vmem:[%s1970 + $0x28] sm:$0xff]
      %v1977 = vld [vmem:[%s1970 + $0x30] sm:$0xff]
      %v1978 = vld [vmem:[%s1970 + $0x38] sm:$0xff]
      %v1979 = vxor.u32 %v1962, 2147483648
      %v1980 = vxor.u32 %v1963, 2147483648
      %v1981 = vxor.u32 %v1964, 2147483648
      %v1982 = vxor.u32 %v1965, 2147483648
      %v1983 = vxor.u32 %v1966, 2147483648
      %v1984 = vxor.u32 %v1967, 2147483648
      %v1985 = vxor.u32 %v1968, 2147483648
      %v1986 = vxor.u32 %v1969, 2147483648
      %v1987 = vmul.f32 %v1979, 1.442695
      %v1988 = vpow.pop %v1987
      %v1989 = vmul.f32 %v1980, 1.442695
      %v1990 = vpow.pop %v1989
      %v1991 = vmul.f32 %v1981, 1.442695
      %v1992 = vpow.pop %v1991
      %v1993 = vmul.f32 %v1982, 1.442695
      %v1994 = vpow.pop %v1993
      %v1995 = vmul.f32 %v1983, 1.442695
      %v1996 = vpow.pop %v1995
      %v1997 = vmul.f32 %v1984, 1.442695
      %v1998 = vpow.pop %v1997
      %v1999 = vmul.f32 %v1985, 1.442695
      %v2000 = vpow.pop %v1999
      %v2001 = vmul.f32 %v1986, 1.442695
      %v2002 = vpow.pop %v2001
      %v2003 = vadd.f32 %v1988, 1.0
      %v2004 = vadd.f32 %v1990, 1.0
      %v2005 = vadd.f32 %v1992, 1.0
      %v2006 = vadd.f32 %v1994, 1.0
      %v2007 = vadd.f32 %v1996, 1.0
      %v2008 = vadd.f32 %v1998, 1.0
      %v2009 = vadd.f32 %v2000, 1.0
      %v2010 = vadd.f32 %v2002, 1.0
      %v2011 = vrcp.pop %v2003
      %v2012 = vmul.f32 1.0, %v2011
      %v2013 = vrcp.pop %v2004
      %v2014 = vmul.f32 1.0, %v2013
      %v2015 = vrcp.pop %v2005
      %v2016 = vmul.f32 1.0, %v2015
      %v2017 = vrcp.pop %v2006
      %v2018 = vmul.f32 1.0, %v2017
      %v2019 = vrcp.pop %v2007
      %v2020 = vmul.f32 1.0, %v2019
      %v2021 = vrcp.pop %v2008
      %v2022 = vmul.f32 1.0, %v2021
      %v2023 = vrcp.pop %v2009
      %v2024 = vmul.f32 1.0, %v2023
      %v2025 = vrcp.pop %v2010
      %v2026 = vmul.f32 1.0, %v2025
      %v2027 = vadd.f32 %v2012, 0.5
      %v2028 = vadd.f32 %v2014, 0.5
      %v2029 = vadd.f32 %v2016, 0.5
      %v2030 = vadd.f32 %v2018, 0.5
      %v2031 = vadd.f32 %v2020, 0.5
      %v2032 = vadd.f32 %v2022, 0.5
      %v2033 = vadd.f32 %v2024, 0.5
      %v2034 = vadd.f32 %v2026, 0.5
      %v2035 = vmul.f32 %v1971, %v2027
      %v2036 = vmul.f32 %v1972, %v2028
      %v2037 = vmul.f32 %v1973, %v2029
      %v2038 = vmul.f32 %v1974, %v2030
      %v2039 = vmul.f32 %v1975, %v2031
      %v2040 = vmul.f32 %v1976, %v2032
      %v2041 = vmul.f32 %v1977, %v2033
      %v2042 = vmul.f32 %v1978, %v2034
      %s2043 = scalar_lea.vmem %s306, 448
      %2044 = vst [vmem:[%s2043] sm:$0xff] %v2035
      %2045 = vst [vmem:[%s2043 + $0x8] sm:$0xff] %v2036
      %2046 = vst [vmem:[%s2043 + $0x10] sm:$0xff] %v2037
      %2047 = vst [vmem:[%s2043 + $0x18] sm:$0xff] %v2038
      %2048 = vst [vmem:[%s2043 + $0x20] sm:$0xff] %v2039
      %2049 = vst [vmem:[%s2043 + $0x28] sm:$0xff] %v2040
      %2050 = vst [vmem:[%s2043 + $0x30] sm:$0xff] %v2041
      %2051 = vst [vmem:[%s2043 + $0x38] sm:$0xff] %v2042
      %p2052 = scmp.lt.s32.totalorder %s20, 1
      %s2053 = scalar_select %p2052, %s20, 1
      %s2054 = smul.addr %s2053, 64
      %s2055 = smul.addr %s2054, 8
      %s2056 = scalar_lea.vmem %s8, %s2055
      // Predicated region
      $region53: #{ral_forward.1} parent=51 // pred_check
        %p2057 = pneg %p211
      $region54: #{ral_forward.1} parent=51 // pred_check_branch
        %2059 = sbr.rel (%p2057) target = $region56
      $region55: #{ral_forward.1} parent=51 // pred_region
        _
      $region56: #{ral_forward.1} parent=51 // pred_fallthru
        _
    $region52: #{ral_forward.1} parent=5 // pred_fallthru
      _
    %p2060 = scmp.le.s32.totalorder 2, %s15
    // Predicated region
    $region57: #{ral_forward.1} parent=5 // pred_check
      %p2061 = pneg %p2060
    $region58: #{ral_forward.1} parent=5 // pred_check_branch
      %2063 = sbr.rel (%p2061) target = $region60
    $region59: #{ral_forward.1} parent=5 // pred_region
      %s2064 = ssub.s32 %s15, 2
      // Predicated region
      $region61: #{ral_forward.1} parent=59 // pred_check
        %p2065 = pneg %p217
      $region62: #{ral_forward.1} parent=59 // pred_check_branch
        %2067 = sbr.rel (%p2065) target = $region64
      $region63: #{ral_forward.1} parent=59 // pred_region
        %p2068 = scmp.lt.s32.totalorder %s21, 1
        %s2069 = scalar_select %p2068, %s21, 1
        %s2070 = smul.addr %s2069, 64
        %s2071 = smul.addr %s2070, 8
        %s2072 = scalar_lea.vmem %s8, %s2071
      $region64: #{ral_forward.1} parent=59 // pred_fallthru
        _
    $region60: #{ral_forward.1} parent=5 // pred_fallthru
      _
  $region6: #{ral_forward.1} parent=0 // loop_footer
    %s19 = sadd.s32 1, %s15
  $region7: #{ral_forward.1} parent=0 // loop_footer_branch
    %14 = sbr.rel target = $region3
  $region8: #{ral_forward.1} parent=0 // loop_exit
    _

</llo_original>
